<compile_context>
chip_gen: v6e
topology: v6e:2x2x1
jax: 0.10.0
libtpu: 0.0.40
codegen_flags: <defaults>
</compile_context>

<pallas_src>
import jax
import jax.numpy as jnp
from jax.experimental import pallas as pl
from jax.experimental.pallas import tpu as pltpu


_SMALL_FASTPATH_ELEMS = 256 * 1024   # below this, XLA's fused sqrt wins
_PAD_COLS = 1024                     # 8 sublanes x 128 lanes
_MAX_TILE_COLS = 4096                # lane-tile cap; multiple of 128


def _sqrt_kernel(x_ref, o_ref):
    o_ref[...] = jnp.sqrt(x_ref[...])


def _sublane_multiple(dtype):
    # Sub-32-bit dtypes pack along sublanes: 8 rows/vreg @4B, 16 @2B, 32 @1B.
    itemsize = jnp.dtype(dtype).itemsize
    return max(8, 32 // max(itemsize, 1))


def _round_up(v, m):
    return ((v + m - 1) // m) * m


def _lane_dense_cols(total):
    # Largest "nice" multiple of 128 that evenly divides the flattened size.
    for c in (4096, 2048, 1024, 512, 384, 256, 128):
        if total % c == 0:
            return c
    return None


def _block_budget_and_vmem_limit():
    """Generation-aware block byte budget + explicit scoped-VMEM limit.

    v5e/v6e: 128 MiB physical VMEM -> 8 MiB blocks (amortize ~0.35us/step),
             64 MiB scoped limit (v5e default is only 16 MiB, so keep explicit).
    v7x / unknown: 64 MiB VMEM per TC -> stay at 4 MiB blocks / 32 MiB limit;
             double-buffered in+out footprint is 4x block bytes = 16 MiB.
    """
    try:
        vmem_cap = getattr(pltpu.get_tpu_info(), "vmem_capacity_bytes", None)
    except Exception:
        vmem_cap = None
    if vmem_cap is not None and vmem_cap >= 100 * 1024 * 1024:
        return 8 * 1024 * 1024, 64 * 1024 * 1024
    return 4 * 1024 * 1024, 32 * 1024 * 1024


def _run_sqrt_2d(x2, sub_m, block_bytes, vmem_limit):
    rows, cols = x2.shape
    itemsize = jnp.dtype(x2.dtype).itemsize

    # Column tiling guards huge trailing dims against VMEM blowup.
    tile_cols = cols if cols <= _MAX_TILE_COLS else _MAX_TILE_COLS

    # Row tiling by byte budget, dtype-aware sublane rounding.
    row_bytes = tile_cols * itemsize
    tile_rows = max(sub_m, (block_bytes // row_bytes) // sub_m * sub_m)
    tile_rows = min(tile_rows, rows)

    n_r = pl.cdiv(rows, tile_rows)
    n_c = pl.cdiv(cols, tile_cols)
    # v7x megacore: on small grids, make the leading (parallel) axis program
    # count even so both TensorCores get balanced work (no-op on v5e/v6e).
    # TODO(synk): consider pltpu.CORE_PARALLEL on this axis after trace check.
    if n_r * n_c < 8 and rows >= 2 * sub_m:
        target_r = max(2, _round_up(n_r, 2))
        tile_rows = max(sub_m, _round_up(pl.cdiv(rows, target_r), sub_m))
        tile_rows = min(tile_rows, rows)
        n_r = pl.cdiv(rows, tile_rows)

    return pl.pallas_call(
        _sqrt_kernel,
        out_shape=jax.ShapeDtypeStruct((rows, cols), x2.dtype),
        grid_spec=pltpu.PrefetchScalarGridSpec(
            num_scalar_prefetch=0,
            grid=(n_r, n_c),
            in_specs=[pl.BlockSpec((tile_rows, tile_cols), lambda i, j: (i, j))],
            out_specs=pl.BlockSpec((tile_rows, tile_cols), lambda i, j: (i, j)),
        ),
        compiler_params=pltpu.CompilerParams(
            dimension_semantics=("parallel", "parallel"),
            vmem_limit_bytes=vmem_limit,
        ),
        cost_estimate=pl.CostEstimate(
            flops=0,
            transcendentals=rows * cols,
            bytes_accessed=2 * rows * cols * itemsize,
        ),
    )(x2)


def pallas_sqrt(x: jax.Array) -> jax.Array:
    """Elementwise sqrt via a Pallas TPU kernel (torch.sqrt semantics)."""
    if not jnp.issubdtype(x.dtype, jnp.floating):
        # torch.sqrt promotes integral/bool inputs to floating point.
        x = x.astype(jnp.float32)

    orig_shape = x.shape
    total = x.size

    # Tiny inputs: pallas_call dispatch + wrapper reshapes dominate the
    # sub-microsecond HBM time -> let XLA's fused sqrt handle it.
    if total == 0 or total < _SMALL_FASTPATH_ELEMS:
        return jnp.sqrt(x)

    sub_m = _sublane_multiple(x.dtype)
    block_bytes, vmem_limit = _block_budget_and_vmem_limit()

    if (x.ndim >= 2 and orig_shape[-1] % 128 == 0
            and total // orig_shape[-1] >= sub_m):
        # Layout-preserving collapse of leading dims: the trailing (lane) dim
        # is untouched, so no relayout copy around the pallas_call.
        cols = orig_shape[-1]
        rows = total // cols
        out = _run_sqrt_2d(x.reshape(rows, cols), sub_m, block_bytes, vmem_limit)
        return out.reshape(orig_shape)

    if total % 128 == 0:
        # Lane-dense reflatten (e.g. 1-D inputs or tiny trailing dims).
        cols = _lane_dense_cols(total)
        rows = total // cols
        out = _run_sqrt_2d(x.reshape(rows, cols), sub_m, block_bytes, vmem_limit)
        return out.reshape(orig_shape)

    # Lane-sparse shapes (odd trailing dim, odd 1-D size): pad the flattened
    # array to a multiple of 1024 (<1% extra bytes), run lane-dense, slice.
    padded = _round_up(total, _PAD_COLS)
    flat = jnp.pad(x.reshape(-1), (0, padded - total))
    out = _run_sqrt_2d(flat.reshape(padded // _PAD_COLS, _PAD_COLS),
                       sub_m, block_bytes, vmem_limit)
    return out.reshape(-1)[:total].reshape(orig_shape)


if __name__ == "__main__":
    key = jax.random.PRNGKey(0)
    k1, k2, k3, k4 = jax.random.split(key, 4)

    # 1) Spec-sized NCHW input (2,4,16,16): tiny -> fast path (jnp.sqrt).
    x_small = jax.random.uniform(k1, (2, 4, 16, 16), dtype=jnp.float32) * 10.0

    # 2) Larger NCHW input, trailing dim 128: Pallas kernel via layout-
    #    preserving leading-dim collapse; even 2-program grid for megacore.
    x_big = jax.random.uniform(k2, (4, 8, 128, 128), dtype=jnp.float32) * 10.0

    # 3) bf16 input: exercises dtype-aware (16-row) sublane rounding.
    x_bf16 = (jax.random.uniform(k3, (4, 8, 128, 128), dtype=jnp.float32)
              * 10.0).astype(jnp.bfloat16)

    # 4) Odd trailing dim (lane-sparse): pad-to-1024 / slice fallback path.
    x_odd = jax.random.uniform(k4, (2050, 130), dtype=jnp.float32) * 10.0

    inputs = (x_small, x_big, x_bf16, x_odd)
    outs = [pallas_sqrt(x) for x in inputs]
    jax.block_until_ready(outs)

    for y, x in zip(outs, inputs):
        assert y.shape == x.shape and y.dtype == x.dtype
        ref = jnp.sqrt(x.astype(jnp.float32))
        tol = 1e-2 if x.dtype == jnp.bfloat16 else 1e-5
        assert jnp.allclose(y.astype(jnp.float32), ref, atol=tol, rtol=tol)

    print("KERNEL_OK")
</pallas_src>

<mosaic_0001>
module attributes {stable_mosaic.version = 11 : i64} {
  func.func @_sqrt_kernel(%arg0: i32, %arg1: i32, %arg2: memref<2048x128xf32, #tpu.memory_space<vmem>>, %arg3: memref<2048x128xf32, #tpu.memory_space<vmem>>) attributes {dimension_semantics = [#tpu.dimension_semantics<parallel>, #tpu.dimension_semantics<parallel>], iteration_bounds = array<i64: 2, 1>, scalar_prefetch = 0 : i64, scratch_operands = 0 : i64, tpu.core_type = #tpu.core_type<tc>, window_params = [{transform_indices = @transform_0, window_bounds = array<i64: 2048, 128>}, {transform_indices = @transform_1, window_bounds = array<i64: 2048, 128>}]} {
    %c0 = arith.constant 0 : index
    %c0_0 = arith.constant 0 : index
    %0 = vector.load %arg2[%c0, %c0_0] : memref<2048x128xf32, #tpu.memory_space<vmem>>, vector<2048x128xf32>
    %1 = math.sqrt %0 : vector<2048x128xf32>
    %c0_1 = arith.constant 0 : index
    %c0_2 = arith.constant 0 : index
    %2 = vector.load %arg3[%c0_1, %c0_2] : memref<2048x128xf32, #tpu.memory_space<vmem>>, vector<2048x128xf32>
    tpu.vector_store %arg3[%c0_1, %c0_2], %1 {strides = array<i32>} : memref<2048x128xf32, #tpu.memory_space<vmem>>, vector<2048x128xf32>,
    return
  }
  func.func @transform_0(%arg0: i32, %arg1: i32) -> (i32, i32) {
    %c0_i32 = arith.constant 0 : i32
    return %arg0, %arg1 : i32, i32
  }
  func.func @transform_1(%arg0: i32, %arg1: i32) -> (i32, i32) {
    %c0_i32 = arith.constant 0 : i32
    return %arg0, %arg1 : i32, i32
  }
}

</mosaic_0001>

<llo_original>
// kernel: tpu_custom_call.1
$region0: #{tpu_custom_call.1}
  #allocation0 [shape = 'u32[]', space=smem, size = 0x4, offset = 0x4, fixed_abs, tag = 'smem constant byte address 0x4 - core index']
  #allocation1 [shape = 'u32[144,128]{1,0:T(1,128)}', space=vmem, size = 0x12000, scoped, tag = 'internal scratch']
  %s0 = inlined_call_operand.hbm [shape: f32[4096,128], index: 0, kind: input, shape index: {}]
  %s1 = inlined_call_operand.hbm [shape: f32[4096,128], index: 1, kind: output, shape index: {}]
  %s2 = sld [smem:[#allocation0]]
  $region41: #{tpu_custom_call.1} parent=0
    _
  %s4 = ssub.s32 1, %s2
  %s5 = scalar_select 0, %s4, %s2
  $region1: #{tpu_custom_call.1} parent=0
    #allocation2 [shape = 'u8[2097152]{0}', space=vmem, size = 0x200000, scoped, tag = 'input window, operand 0']
    #allocation3 [shape = 's32[2]{0}', space=sflag, size = 0x8, scoped, tag = 'scoped memory for tpu_custom_call.1']
    #allocation4 [shape = 's32[2]{0}', space=sflag, size = 0x8, scoped, tag = 'scoped memory for tpu_custom_call.1']
    #allocation5 [shape = 'u8[2097152]{0}', space=vmem, size = 0x200000, scoped, tag = 'output window, operand 0']
    %6 = vsyncpa [#allocation3], 0
    %s7 = scalar_lea.sflag [#allocation3], 1
    %8 = vsyncpa %s7, 0
    %9 = vsyncpa [#allocation4], 0
    %s10 = scalar_lea.sflag [#allocation4], 1
    %11 = vsyncpa %s10, 0
    loop: start=0, step=1, limit=4
    $region2: #{tpu_custom_call.1} parent=1 // loop_pre_header
      _
    $region3: #{tpu_custom_call.1} parent=1 // loop_header
      %s13 = sphi 0, %s17
      %p14 = scmp.ge.s32.totalorder %s13, 4
      %s20 = sphi 0, %s32
      %s21 = sphi 0, %s28
      %s22 = sphi 0, %s20
      %s23 = sphi 0, %s21
      %s24 = sphi 0, %s22
      %s25 = sphi 0, %s23
      %s37 = sphi 0, %s39
      %s40 = sphi 0, %s37
      %s41 = sphi 0, %s40
      %s57 = sphi 0, %s41
      %s65 = sphi 0, %s67
      %s68 = sphi 0, %s65
      %s69 = sphi 0, %s68
      %s85 = sphi 0, %s69
    $region4: #{tpu_custom_call.1} parent=1 // loop_header_branch
      %16 = sbr.rel (%p14) target = $region8
    $region5: #{tpu_custom_call.1} parent=1 // loop_body
      %s18 = ssub.s32 %s13, 1
      %s19 = ssub.s32 %s13, 2
      %s26 = sadd.s32 1, %s21
      %p27 = scmp.ge.s32.totalorder %s26, 1
      %s28 = scalar_select %p27, 0, %s26
      %s29 = sadd.s32 1, %s20
      %s30 = scalar_select %p27, %s29, %s20
      %p31 = scmp.ge.s32.totalorder %s30, 2
      %s32 = scalar_select %p31, 0, %s30
      %s33 = ssub.s32 %s20, %s32
      %s34 = ssub.s32 %s21, %s28
      %s35 = sor.u32 %s33, %s34
      %p36 = scmp.eq.s32.totalorder %s35, 0
      %s38 = sadd.s32 %s37, 1
      %s39 = scalar_select %p36, %s37, %s38
      %p42 = pneg %p36
      %p43 = scmp.eq.s32.totalorder %s13, 1
      %p44 = por %p42, %p43
      %p45 = scmp.ne.s32.totalorder %s37, %s40
      %p46 = scmp.eq.s32.totalorder %s13, 0
      %p47 = por %p45, %p46
      %p48 = scmp.ne.s32.totalorder %s37, %s40
      %p49 = scmp.eq.s32.totalorder %s18, 1
      %p50 = por %p48, %p49
      %p51 = scmp.ne.s32.totalorder %s40, %s41
      %p52 = scmp.eq.s32.totalorder %s18, 0
      %p53 = por %p51, %p52
      %p54 = scmp.ne.s32.totalorder %s40, %s41
      %p55 = scmp.eq.s32.totalorder %s19, 1
      %p56 = por %p54, %p55
      %p58 = scmp.ne.s32.totalorder %s41, %s57
      %p59 = scmp.eq.s32.totalorder %s19, 0
      %p60 = por %p58, %p59
      %s61 = ssub.s32 %s20, %s32
      %s62 = ssub.s32 %s21, %s28
      %s63 = sor.u32 %s61, %s62
      %p64 = scmp.eq.s32.totalorder %s63, 0
      %s66 = sadd.s32 %s65, 1
      %s67 = scalar_select %p64, %s65, %s66
      %p70 = pneg %p64
      %p71 = scmp.eq.s32.totalorder %s13, 1
      %p72 = por %p70, %p71
      %p73 = scmp.ne.s32.totalorder %s65, %s68
      %p74 = scmp.eq.s32.totalorder %s13, 0
      %p75 = por %p73, %p74
      %p76 = scmp.ne.s32.totalorder %s65, %s68
      %p77 = scmp.eq.s32.totalorder %s18, 1
      %p78 = por %p76, %p77
      %p79 = scmp.ne.s32.totalorder %s68, %s69
      %p80 = scmp.eq.s32.totalorder %s18, 0
      %p81 = por %p79, %p80
      %p82 = scmp.ne.s32.totalorder %s68, %s69
      %p83 = scmp.eq.s32.totalorder %s19, 1
      %p84 = por %p82, %p83
      %p86 = scmp.ne.s32.totalorder %s69, %s85
      %p87 = scmp.eq.s32.totalorder %s19, 0
      %p88 = por %p86, %p87
      %p89 = scmp.le.s32.totalorder 1, %s13
      %p90 = scmp.lt.s32.totalorder %s13, 3
      %p91 = pnand %p89, %p90
      %p92 = pneg %p91
      // Predicated region
      $region9: #{tpu_custom_call.1} parent=5 // pred_check
        _
      $region10: #{tpu_custom_call.1} parent=5 // pred_check_branch
        %94 = sbr.rel (%p91) target = $region12
      $region11: #{tpu_custom_call.1} parent=5 // pred_region
        %s95 = ssub.s32 %s13, 1
      $region12: #{tpu_custom_call.1} parent=5 // pred_fallthru
        _
      %p96 = scmp.lt.s32.totalorder %s13, 2
      // Predicated region
      $region13: #{tpu_custom_call.1} parent=5 // pred_check
        %p97 = pneg %p96
      $region14: #{tpu_custom_call.1} parent=5 // pred_check_branch
        %99 = sbr.rel (%p97) target = $region16
      $region15: #{tpu_custom_call.1} parent=5 // pred_region
        // Predicated region
        $region17: #{tpu_custom_call.1} parent=15 // pred_check
          %p100 = pneg %p47
        $region18: #{tpu_custom_call.1} parent=15 // pred_check_branch
          %102 = sbr.rel (%p100) target = $region20
        $region19: #{tpu_custom_call.1} parent=15 // pred_region
          %s103 = sand.u32 %s37, 1
          %s104 = scalar_lea.sflag [#allocation3], %s103
          %s105 = sand.u32 %s37, 1
          %s106 = smul.addr %s105, 2048
          %s107 = scalar_lea.vmem [#allocation2], %s106
          %s108 = smul.u32 256, %s20
          %s110 = ssub.s32 32768, 32768
          %111 = vsyncadd %s104, %s110
          %s112 = sadd.s32 %s21, %s108
          %s113 = smul.addr %s112, 128
          %s114 = scalar_lea.hbm %s0, %s113
          %s115 = sshll.u32 %s107, 4
          %s116 = int_to_ptr.vmem [resolvable:$true] %s115
          %121 = dma.hbm_to_vmem [thread:$0]  %s114, 32768, %s116, %s104, 128, 128, 8
        $region20: #{tpu_custom_call.1} parent=15 // pred_fallthru
          _
      $region16: #{tpu_custom_call.1} parent=5 // pred_fallthru
        _
      %p122 = scmp.le.s32.totalorder 1, %s13
      %p123 = scmp.lt.s32.totalorder %s13, 3
      %p124 = pnand %p122, %p123
      %p125 = pneg %p124
      // Predicated region
      $region21: #{tpu_custom_call.1} parent=5 // pred_check
        _
      $region22: #{tpu_custom_call.1} parent=5 // pred_check_branch
        %127 = sbr.rel (%p124) target = $region24
      $region23: #{tpu_custom_call.1} parent=5 // pred_region
        %s128 = ssub.s32 %s13, 1
        %s129 = sand.u32 %s40, 1
        %s130 = scalar_lea.sflag [#allocation3], %s129
        %s131 = sand.u32 %s40, 1
        %s132 = smul.addr %s131, 2048
        %s133 = scalar_lea.vmem [#allocation2], %s132
        // Predicated region
        $region25: #{tpu_custom_call.1} parent=23 // pred_check
          %p134 = pneg %p53
        $region26: #{tpu_custom_call.1} parent=23 // pred_check_branch
          %136 = sbr.rel (%p134) target = $region28
        $region27: #{tpu_custom_call.1} parent=23 // pred_region
          %137 = dma.done %s130, 32768
        $region28: #{tpu_custom_call.1} parent=23 // pred_fallthru
          _
        %s138 = sand.u32 %s40, 1
        %s139 = scalar_lea.sflag [#allocation3], %s138
        %s140 = sand.u32 %s40, 1
        %s141 = smul.addr %s140, 2048
        %s142 = scalar_lea.vmem [#allocation2], %s141
        %p143 = pneg %p53
        %p144 = pneg %p50
        %p145 = pneg %p81
        %p146 = pneg %p78
        %s147 = sand.u32 %s68, 1
        %s148 = scalar_lea.sflag [#allocation4], %s147
        %s149 = sand.u32 %s68, 1
        %s150 = smul.addr %s149, 2048
        %s151 = scalar_lea.vmem [#allocation5], %s150
        %s152 = smul.u32 256, %s22
        %s153 = smul.u32 256, %s22
        %v154 = vld [vmem:[%s133] sm:$0xff]
        %v155 = vld [vmem:[%s133 + $0x8] sm:$0xff]
        %v156 = vld [vmem:[%s133 + $0x10] sm:$0xff]
        %v157 = vld [vmem:[%s133 + $0x18] sm:$0xff]
        %v158 = vld [vmem:[%s133 + $0x20] sm:$0xff]
        %v159 = vld [vmem:[%s133 + $0x28] sm:$0xff]
        %v160 = vld [vmem:[%s133 + $0x30] sm:$0xff]
        %v161 = vld [vmem:[%s133 + $0x38] sm:$0xff]
        %v162 = vld [vmem:[%s133 + $0x40] sm:$0xff]
        %v163 = vld [vmem:[%s133 + $0x48] sm:$0xff]
        %v164 = vld [vmem:[%s133 + $0x50] sm:$0xff]
        %v165 = vld [vmem:[%s133 + $0x58] sm:$0xff]
        %v166 = vld [vmem:[%s133 + $0x60] sm:$0xff]
        %v167 = vld [vmem:[%s133 + $0x68] sm:$0xff]
        %v168 = vld [vmem:[%s133 + $0x70] sm:$0xff]
        %v169 = vld [vmem:[%s133 + $0x78] sm:$0xff]
        %v170 = vld [vmem:[%s133 + $0x80] sm:$0xff]
        %v171 = vld [vmem:[%s133 + $0x88] sm:$0xff]
        %v172 = vld [vmem:[%s133 + $0x90] sm:$0xff]
        %v173 = vld [vmem:[%s133 + $0x98] sm:$0xff]
        %v174 = vld [vmem:[%s133 + $0xa0] sm:$0xff]
        %v175 = vld [vmem:[%s133 + $0xa8] sm:$0xff]
        %v176 = vld [vmem:[%s133 + $0xb0] sm:$0xff]
        %v177 = vld [vmem:[%s133 + $0xb8] sm:$0xff]
        %v178 = vld [vmem:[%s133 + $0xc0] sm:$0xff]
        %v179 = vld [vmem:[%s133 + $0xc8] sm:$0xff]
        %v180 = vld [vmem:[%s133 + $0xd0] sm:$0xff]
        %v181 = vld [vmem:[%s133 + $0xd8] sm:$0xff]
        %v182 = vld [vmem:[%s133 + $0xe0] sm:$0xff]
        %v183 = vld [vmem:[%s133 + $0xe8] sm:$0xff]
        %v184 = vld [vmem:[%s133 + $0xf0] sm:$0xff]
        %v185 = vld [vmem:[%s133 + $0xf8] sm:$0xff]
        %v186 = vld [vmem:[%s133 + $0x100] sm:$0xff]
        %v187 = vld [vmem:[%s133 + $0x108] sm:$0xff]
        %v188 = vld [vmem:[%s133 + $0x110] sm:$0xff]
        %v189 = vld [vmem:[%s133 + $0x118] sm:$0xff]
        %v190 = vld [vmem:[%s133 + $0x120] sm:$0xff]
        %v191 = vld [vmem:[%s133 + $0x128] sm:$0xff]
        %v192 = vld [vmem:[%s133 + $0x130] sm:$0xff]
        %v193 = vld [vmem:[%s133 + $0x138] sm:$0xff]
        %v194 = vld [vmem:[%s133 + $0x140] sm:$0xff]
        %v195 = vld [vmem:[%s133 + $0x148] sm:$0xff]
        %v196 = vld [vmem:[%s133 + $0x150] sm:$0xff]
        %v197 = vld [vmem:[%s133 + $0x158] sm:$0xff]
        %v198 = vld [vmem:[%s133 + $0x160] sm:$0xff]
        %v199 = vld [vmem:[%s133 + $0x168] sm:$0xff]
        %v200 = vld [vmem:[%s133 + $0x170] sm:$0xff]
        %v201 = vld [vmem:[%s133 + $0x178] sm:$0xff]
        %v202 = vld [vmem:[%s133 + $0x180] sm:$0xff]
        %v203 = vld [vmem:[%s133 + $0x188] sm:$0xff]
        %v204 = vld [vmem:[%s133 + $0x190] sm:$0xff]
        %v205 = vld [vmem:[%s133 + $0x198] sm:$0xff]
        %v206 = vld [vmem:[%s133 + $0x1a0] sm:$0xff]
        %v207 = vld [vmem:[%s133 + $0x1a8] sm:$0xff]
        %v208 = vld [vmem:[%s133 + $0x1b0] sm:$0xff]
        %v209 = vld [vmem:[%s133 + $0x1b8] sm:$0xff]
        %v210 = vld [vmem:[%s133 + $0x1c0] sm:$0xff]
        %v211 = vld [vmem:[%s133 + $0x1c8] sm:$0xff]
        %v212 = vld [vmem:[%s133 + $0x1d0] sm:$0xff]
        %v213 = vld [vmem:[%s133 + $0x1d8] sm:$0xff]
        %v214 = vld [vmem:[%s133 + $0x1e0] sm:$0xff]
        %v215 = vld [vmem:[%s133 + $0x1e8] sm:$0xff]
        %v216 = vld [vmem:[%s133 + $0x1f0] sm:$0xff]
        %v217 = vld [vmem:[%s133 + $0x1f8] sm:$0xff]
        %v218 = vld [vmem:[%s133 + $0x200] sm:$0xff]
        %v219 = vld [vmem:[%s133 + $0x208] sm:$0xff]
        %v220 = vld [vmem:[%s133 + $0x210] sm:$0xff]
        %v221 = vld [vmem:[%s133 + $0x218] sm:$0xff]
        %v222 = vld [vmem:[%s133 + $0x220] sm:$0xff]
        %v223 = vld [vmem:[%s133 + $0x228] sm:$0xff]
        %v224 = vld [vmem:[%s133 + $0x230] sm:$0xff]
        %v225 = vld [vmem:[%s133 + $0x238] sm:$0xff]
        %v226 = vld [vmem:[%s133 + $0x240] sm:$0xff]
        %v227 = vld [vmem:[%s133 + $0x248] sm:$0xff]
        %v228 = vld [vmem:[%s133 + $0x250] sm:$0xff]
        %v229 = vld [vmem:[%s133 + $0x258] sm:$0xff]
        %v230 = vld [vmem:[%s133 + $0x260] sm:$0xff]
        %v231 = vld [vmem:[%s133 + $0x268] sm:$0xff]
        %v232 = vld [vmem:[%s133 + $0x270] sm:$0xff]
        %v233 = vld [vmem:[%s133 + $0x278] sm:$0xff]
        %v234 = vld [vmem:[%s133 + $0x280] sm:$0xff]
        %v235 = vld [vmem:[%s133 + $0x288] sm:$0xff]
        %v236 = vld [vmem:[%s133 + $0x290] sm:$0xff]
        %v237 = vld [vmem:[%s133 + $0x298] sm:$0xff]
        %v238 = vld [vmem:[%s133 + $0x2a0] sm:$0xff]
        %v239 = vld [vmem:[%s133 + $0x2a8] sm:$0xff]
        %v240 = vld [vmem:[%s133 + $0x2b0] sm:$0xff]
        %v241 = vld [vmem:[%s133 + $0x2b8] sm:$0xff]
        %v242 = vld [vmem:[%s133 + $0x2c0] sm:$0xff]
        %v243 = vld [vmem:[%s133 + $0x2c8] sm:$0xff]
        %v244 = vld [vmem:[%s133 + $0x2d0] sm:$0xff]
        %v245 = vld [vmem:[%s133 + $0x2d8] sm:$0xff]
        %v246 = vld [vmem:[%s133 + $0x2e0] sm:$0xff]
        %v247 = vld [vmem:[%s133 + $0x2e8] sm:$0xff]
        %v248 = vld [vmem:[%s133 + $0x2f0] sm:$0xff]
        %v249 = vld [vmem:[%s133 + $0x2f8] sm:$0xff]
        %v250 = vld [vmem:[%s133 + $0x300] sm:$0xff]
        %v251 = vld [vmem:[%s133 + $0x308] sm:$0xff]
        %v252 = vld [vmem:[%s133 + $0x310] sm:$0xff]
        %v253 = vld [vmem:[%s133 + $0x318] sm:$0xff]
        %v254 = vld [vmem:[%s133 + $0x320] sm:$0xff]
        %v255 = vld [vmem:[%s133 + $0x328] sm:$0xff]
        %v256 = vld [vmem:[%s133 + $0x330] sm:$0xff]
        %v257 = vld [vmem:[%s133 + $0x338] sm:$0xff]
        %v258 = vld [vmem:[%s133 + $0x340] sm:$0xff]
        %v259 = vld [vmem:[%s133 + $0x348] sm:$0xff]
        %v260 = vld [vmem:[%s133 + $0x350] sm:$0xff]
        %v261 = vld [vmem:[%s133 + $0x358] sm:$0xff]
        %v262 = vld [vmem:[%s133 + $0x360] sm:$0xff]
        %v263 = vld [vmem:[%s133 + $0x368] sm:$0xff]
        %v264 = vld [vmem:[%s133 + $0x370] sm:$0xff]
        %v265 = vld [vmem:[%s133 + $0x378] sm:$0xff]
        %v266 = vld [vmem:[%s133 + $0x380] sm:$0xff]
        %v267 = vld [vmem:[%s133 + $0x388] sm:$0xff]
        %v268 = vld [vmem:[%s133 + $0x390] sm:$0xff]
        %v269 = vld [vmem:[%s133 + $0x398] sm:$0xff]
        %v270 = vld [vmem:[%s133 + $0x3a0] sm:$0xff]
        %v271 = vld [vmem:[%s133 + $0x3a8] sm:$0xff]
        %v272 = vld [vmem:[%s133 + $0x3b0] sm:$0xff]
        %v273 = vld [vmem:[%s133 + $0x3b8] sm:$0xff]
        %v274 = vld [vmem:[%s133 + $0x3c0] sm:$0xff]
        %v275 = vld [vmem:[%s133 + $0x3c8] sm:$0xff]
        %v276 = vld [vmem:[%s133 + $0x3d0] sm:$0xff]
        %v277 = vld [vmem:[%s133 + $0x3d8] sm:$0xff]
        %v278 = vld [vmem:[%s133 + $0x3e0] sm:$0xff]
        %v279 = vld [vmem:[%s133 + $0x3e8] sm:$0xff]
        %v280 = vld [vmem:[%s133 + $0x3f0] sm:$0xff]
        %v281 = vld [vmem:[%s133 + $0x3f8] sm:$0xff]
        %v282 = vld [vmem:[%s133 + $0x400] sm:$0xff]
        %v283 = vld [vmem:[%s133 + $0x408] sm:$0xff]
        %v284 = vld [vmem:[%s133 + $0x410] sm:$0xff]
        %v285 = vld [vmem:[%s133 + $0x418] sm:$0xff]
        %v286 = vld [vmem:[%s133 + $0x420] sm:$0xff]
        %v287 = vld [vmem:[%s133 + $0x428] sm:$0xff]
        %v288 = vld [vmem:[%s133 + $0x430] sm:$0xff]
        %v289 = vld [vmem:[%s133 + $0x438] sm:$0xff]
        %v290 = vld [vmem:[%s133 + $0x440] sm:$0xff]
        %v291 = vld [vmem:[%s133 + $0x448] sm:$0xff]
        %v292 = vld [vmem:[%s133 + $0x450] sm:$0xff]
        %v293 = vld [vmem:[%s133 + $0x458] sm:$0xff]
        %v294 = vld [vmem:[%s133 + $0x460] sm:$0xff]
        %v295 = vld [vmem:[%s133 + $0x468] sm:$0xff]
        %v296 = vld [vmem:[%s133 + $0x470] sm:$0xff]
        %v297 = vld [vmem:[%s133 + $0x478] sm:$0xff]
        %v298 = vld [vmem:[%s133 + $0x480] sm:$0xff]
        %v299 = vld [vmem:[%s133 + $0x488] sm:$0xff]
        %v300 = vld [vmem:[%s133 + $0x490] sm:$0xff]
        %v301 = vld [vmem:[%s133 + $0x498] sm:$0xff]
        %v302 = vld [vmem:[%s133 + $0x4a0] sm:$0xff]
        %v303 = vld [vmem:[%s133 + $0x4a8] sm:$0xff]
        %v304 = vld [vmem:[%s133 + $0x4b0] sm:$0xff]
        %v305 = vld [vmem:[%s133 + $0x4b8] sm:$0xff]
        %v306 = vld [vmem:[%s133 + $0x4c0] sm:$0xff]
        %v307 = vld [vmem:[%s133 + $0x4c8] sm:$0xff]
        %v308 = vld [vmem:[%s133 + $0x4d0] sm:$0xff]
        %v309 = vld [vmem:[%s133 + $0x4d8] sm:$0xff]
        %v310 = vld [vmem:[%s133 + $0x4e0] sm:$0xff]
        %v311 = vld [vmem:[%s133 + $0x4e8] sm:$0xff]
        %v312 = vld [vmem:[%s133 + $0x4f0] sm:$0xff]
        %v313 = vld [vmem:[%s133 + $0x4f8] sm:$0xff]
        %v314 = vld [vmem:[%s133 + $0x500] sm:$0xff]
        %v315 = vld [vmem:[%s133 + $0x508] sm:$0xff]
        %v316 = vld [vmem:[%s133 + $0x510] sm:$0xff]
        %v317 = vld [vmem:[%s133 + $0x518] sm:$0xff]
        %v318 = vld [vmem:[%s133 + $0x520] sm:$0xff]
        %v319 = vld [vmem:[%s133 + $0x528] sm:$0xff]
        %v320 = vld [vmem:[%s133 + $0x530] sm:$0xff]
        %v321 = vld [vmem:[%s133 + $0x538] sm:$0xff]
        %v322 = vld [vmem:[%s133 + $0x540] sm:$0xff]
        %v323 = vld [vmem:[%s133 + $0x548] sm:$0xff]
        %v324 = vld [vmem:[%s133 + $0x550] sm:$0xff]
        %v325 = vld [vmem:[%s133 + $0x558] sm:$0xff]
        %v326 = vld [vmem:[%s133 + $0x560] sm:$0xff]
        %v327 = vld [vmem:[%s133 + $0x568] sm:$0xff]
        %v328 = vld [vmem:[%s133 + $0x570] sm:$0xff]
        %v329 = vld [vmem:[%s133 + $0x578] sm:$0xff]
        %v330 = vld [vmem:[%s133 + $0x580] sm:$0xff]
        %v331 = vld [vmem:[%s133 + $0x588] sm:$0xff]
        %v332 = vld [vmem:[%s133 + $0x590] sm:$0xff]
        %v333 = vld [vmem:[%s133 + $0x598] sm:$0xff]
        %v334 = vld [vmem:[%s133 + $0x5a0] sm:$0xff]
        %v335 = vld [vmem:[%s133 + $0x5a8] sm:$0xff]
        %v336 = vld [vmem:[%s133 + $0x5b0] sm:$0xff]
        %v337 = vld [vmem:[%s133 + $0x5b8] sm:$0xff]
        %v338 = vld [vmem:[%s133 + $0x5c0] sm:$0xff]
        %v339 = vld [vmem:[%s133 + $0x5c8] sm:$0xff]
        %v340 = vld [vmem:[%s133 + $0x5d0] sm:$0xff]
        %v341 = vld [vmem:[%s133 + $0x5d8] sm:$0xff]
        %v342 = vld [vmem:[%s133 + $0x5e0] sm:$0xff]
        %v343 = vld [vmem:[%s133 + $0x5e8] sm:$0xff]
        %v344 = vld [vmem:[%s133 + $0x5f0] sm:$0xff]
        %v345 = vld [vmem:[%s133 + $0x5f8] sm:$0xff]
        %v346 = vld [vmem:[%s133 + $0x600] sm:$0xff]
        %v347 = vld [vmem:[%s133 + $0x608] sm:$0xff]
        %v348 = vld [vmem:[%s133 + $0x610] sm:$0xff]
        %v349 = vld [vmem:[%s133 + $0x618] sm:$0xff]
        %v350 = vld [vmem:[%s133 + $0x620] sm:$0xff]
        %v351 = vld [vmem:[%s133 + $0x628] sm:$0xff]
        %v352 = vld [vmem:[%s133 + $0x630] sm:$0xff]
        %v353 = vld [vmem:[%s133 + $0x638] sm:$0xff]
        %v354 = vld [vmem:[%s133 + $0x640] sm:$0xff]
        %v355 = vld [vmem:[%s133 + $0x648] sm:$0xff]
        %v356 = vld [vmem:[%s133 + $0x650] sm:$0xff]
        %v357 = vld [vmem:[%s133 + $0x658] sm:$0xff]
        %v358 = vld [vmem:[%s133 + $0x660] sm:$0xff]
        %v359 = vld [vmem:[%s133 + $0x668] sm:$0xff]
        %v360 = vld [vmem:[%s133 + $0x670] sm:$0xff]
        %v361 = vld [vmem:[%s133 + $0x678] sm:$0xff]
        %v362 = vld [vmem:[%s133 + $0x680] sm:$0xff]
        %v363 = vld [vmem:[%s133 + $0x688] sm:$0xff]
        %v364 = vld [vmem:[%s133 + $0x690] sm:$0xff]
        %v365 = vld [vmem:[%s133 + $0x698] sm:$0xff]
        %v366 = vld [vmem:[%s133 + $0x6a0] sm:$0xff]
        %v367 = vld [vmem:[%s133 + $0x6a8] sm:$0xff]
        %v368 = vld [vmem:[%s133 + $0x6b0] sm:$0xff]
        %v369 = vld [vmem:[%s133 + $0x6b8] sm:$0xff]
        %v370 = vld [vmem:[%s133 + $0x6c0] sm:$0xff]
        %v371 = vld [vmem:[%s133 + $0x6c8] sm:$0xff]
        %v372 = vld [vmem:[%s133 + $0x6d0] sm:$0xff]
        %v373 = vld [vmem:[%s133 + $0x6d8] sm:$0xff]
        %v374 = vld [vmem:[%s133 + $0x6e0] sm:$0xff]
        %v375 = vld [vmem:[%s133 + $0x6e8] sm:$0xff]
        %v376 = vld [vmem:[%s133 + $0x6f0] sm:$0xff]
        %v377 = vld [vmem:[%s133 + $0x6f8] sm:$0xff]
        %v378 = vld [vmem:[%s133 + $0x700] sm:$0xff]
        %v379 = vld [vmem:[%s133 + $0x708] sm:$0xff]
        %v380 = vld [vmem:[%s133 + $0x710] sm:$0xff]
        %v381 = vld [vmem:[%s133 + $0x718] sm:$0xff]
        %v382 = vld [vmem:[%s133 + $0x720] sm:$0xff]
        %v383 = vld [vmem:[%s133 + $0x728] sm:$0xff]
        %v384 = vld [vmem:[%s133 + $0x730] sm:$0xff]
        %v385 = vld [vmem:[%s133 + $0x738] sm:$0xff]
        %v386 = vld [vmem:[%s133 + $0x740] sm:$0xff]
        %v387 = vld [vmem:[%s133 + $0x748] sm:$0xff]
        %v388 = vld [vmem:[%s133 + $0x750] sm:$0xff]
        %v389 = vld [vmem:[%s133 + $0x758] sm:$0xff]
        %v390 = vld [vmem:[%s133 + $0x760] sm:$0xff]
        %v391 = vld [vmem:[%s133 + $0x768] sm:$0xff]
        %v392 = vld [vmem:[%s133 + $0x770] sm:$0xff]
        %v393 = vld [vmem:[%s133 + $0x778] sm:$0xff]
        %v394 = vld [vmem:[%s133 + $0x780] sm:$0xff]
        %v395 = vld [vmem:[%s133 + $0x788] sm:$0xff]
        %v396 = vld [vmem:[%s133 + $0x790] sm:$0xff]
        %v397 = vld [vmem:[%s133 + $0x798] sm:$0xff]
        %v398 = vld [vmem:[%s133 + $0x7a0] sm:$0xff]
        %v399 = vld [vmem:[%s133 + $0x7a8] sm:$0xff]
        %v400 = vld [vmem:[%s133 + $0x7b0] sm:$0xff]
        %v401 = vld [vmem:[%s133 + $0x7b8] sm:$0xff]
        %v402 = vld [vmem:[%s133 + $0x7c0] sm:$0xff]
        %v403 = vld [vmem:[%s133 + $0x7c8] sm:$0xff]
        %v404 = vld [vmem:[%s133 + $0x7d0] sm:$0xff]
        %v405 = vld [vmem:[%s133 + $0x7d8] sm:$0xff]
        %v406 = vld [vmem:[%s133 + $0x7e0] sm:$0xff]
        %v407 = vld [vmem:[%s133 + $0x7e8] sm:$0xff]
        %v408 = vld [vmem:[%s133 + $0x7f0] sm:$0xff]
        %v409 = vld [vmem:[%s133 + $0x7f8] sm:$0xff]
        %v410 = vrsqrt.pop %v154
        %v411 = vmul.f32 %v154, %v410
        %vm412 = vcmp.eq.f32.partialorder %v154, inf
        %v413 = vsel %vm412, %v154, %v411
        %vm414 = vcmp.eq.f32.partialorder %v154, 0.0
        %v415 = vand.u32 %v154, 2147483648
        %v416 = vsel %vm414, %v415, %v413
        %v417 = vrsqrt.pop %v155
        %v418 = vmul.f32 %v155, %v417
        %vm419 = vcmp.eq.f32.partialorder %v155, inf
        %v420 = vsel %vm419, %v155, %v418
        %vm421 = vcmp.eq.f32.partialorder %v155, 0.0
        %v422 = vand.u32 %v155, 2147483648
        %v423 = vsel %vm421, %v422, %v420
        %v424 = vrsqrt.pop %v156
        %v425 = vmul.f32 %v156, %v424
        %vm426 = vcmp.eq.f32.partialorder %v156, inf
        %v427 = vsel %vm426, %v156, %v425
        %vm428 = vcmp.eq.f32.partialorder %v156, 0.0
        %v429 = vand.u32 %v156, 2147483648
        %v430 = vsel %vm428, %v429, %v427
        %v431 = vrsqrt.pop %v157
        %v432 = vmul.f32 %v157, %v431
        %vm433 = vcmp.eq.f32.partialorder %v157, inf
        %v434 = vsel %vm433, %v157, %v432
        %vm435 = vcmp.eq.f32.partialorder %v157, 0.0
        %v436 = vand.u32 %v157, 2147483648
        %v437 = vsel %vm435, %v436, %v434
        %v438 = vrsqrt.pop %v158
        %v439 = vmul.f32 %v158, %v438
        %vm440 = vcmp.eq.f32.partialorder %v158, inf
        %v441 = vsel %vm440, %v158, %v439
        %vm442 = vcmp.eq.f32.partialorder %v158, 0.0
        %v443 = vand.u32 %v158, 2147483648
        %v444 = vsel %vm442, %v443, %v441
        %v445 = vrsqrt.pop %v159
        %v446 = vmul.f32 %v159, %v445
        %vm447 = vcmp.eq.f32.partialorder %v159, inf
        %v448 = vsel %vm447, %v159, %v446
        %vm449 = vcmp.eq.f32.partialorder %v159, 0.0
        %v450 = vand.u32 %v159, 2147483648
        %v451 = vsel %vm449, %v450, %v448
        %v452 = vrsqrt.pop %v160
        %v453 = vmul.f32 %v160, %v452
        %vm454 = vcmp.eq.f32.partialorder %v160, inf
        %v455 = vsel %vm454, %v160, %v453
        %vm456 = vcmp.eq.f32.partialorder %v160, 0.0
        %v457 = vand.u32 %v160, 2147483648
        %v458 = vsel %vm456, %v457, %v455
        %v459 = vrsqrt.pop %v161
        %v460 = vmul.f32 %v161, %v459
        %vm461 = vcmp.eq.f32.partialorder %v161, inf
        %v462 = vsel %vm461, %v161, %v460
        %vm463 = vcmp.eq.f32.partialorder %v161, 0.0
        %v464 = vand.u32 %v161, 2147483648
        %v465 = vsel %vm463, %v464, %v462
        %v466 = vrsqrt.pop %v162
        %v467 = vmul.f32 %v162, %v466
        %vm468 = vcmp.eq.f32.partialorder %v162, inf
        %v469 = vsel %vm468, %v162, %v467
        %vm470 = vcmp.eq.f32.partialorder %v162, 0.0
        %v471 = vand.u32 %v162, 2147483648
        %v472 = vsel %vm470, %v471, %v469
        %v473 = vrsqrt.pop %v163
        %v474 = vmul.f32 %v163, %v473
        %vm475 = vcmp.eq.f32.partialorder %v163, inf
        %v476 = vsel %vm475, %v163, %v474
        %vm477 = vcmp.eq.f32.partialorder %v163, 0.0
        %v478 = vand.u32 %v163, 2147483648
        %v479 = vsel %vm477, %v478, %v476
        %v480 = vrsqrt.pop %v164
        %v481 = vmul.f32 %v164, %v480
        %vm482 = vcmp.eq.f32.partialorder %v164, inf
        %v483 = vsel %vm482, %v164, %v481
        %vm484 = vcmp.eq.f32.partialorder %v164, 0.0
        %v485 = vand.u32 %v164, 2147483648
        %v486 = vsel %vm484, %v485, %v483
        %v487 = vrsqrt.pop %v165
        %v488 = vmul.f32 %v165, %v487
        %vm489 = vcmp.eq.f32.partialorder %v165, inf
        %v490 = vsel %vm489, %v165, %v488
        %vm491 = vcmp.eq.f32.partialorder %v165, 0.0
        %v492 = vand.u32 %v165, 2147483648
        %v493 = vsel %vm491, %v492, %v490
        %v494 = vrsqrt.pop %v166
        %v495 = vmul.f32 %v166, %v494
        %vm496 = vcmp.eq.f32.partialorder %v166, inf
        %v497 = vsel %vm496, %v166, %v495
        %vm498 = vcmp.eq.f32.partialorder %v166, 0.0
        %v499 = vand.u32 %v166, 2147483648
        %v500 = vsel %vm498, %v499, %v497
        %v501 = vrsqrt.pop %v167
        %v502 = vmul.f32 %v167, %v501
        %vm503 = vcmp.eq.f32.partialorder %v167, inf
        %v504 = vsel %vm503, %v167, %v502
        %vm505 = vcmp.eq.f32.partialorder %v167, 0.0
        %v506 = vand.u32 %v167, 2147483648
        %v507 = vsel %vm505, %v506, %v504
        %v508 = vrsqrt.pop %v168
        %v509 = vmul.f32 %v168, %v508
        %vm510 = vcmp.eq.f32.partialorder %v168, inf
        %v511 = vsel %vm510, %v168, %v509
        %vm512 = vcmp.eq.f32.partialorder %v168, 0.0
        %v513 = vand.u32 %v168, 2147483648
        %v514 = vsel %vm512, %v513, %v511
        %v515 = vrsqrt.pop %v169
        %v516 = vmul.f32 %v169, %v515
        %vm517 = vcmp.eq.f32.partialorder %v169, inf
        %v518 = vsel %vm517, %v169, %v516
        %vm519 = vcmp.eq.f32.partialorder %v169, 0.0
        %v520 = vand.u32 %v169, 2147483648
        %v521 = vsel %vm519, %v520, %v518
        %v522 = vrsqrt.pop %v170
        %v523 = vmul.f32 %v170, %v522
        %vm524 = vcmp.eq.f32.partialorder %v170, inf
        %v525 = vsel %vm524, %v170, %v523
        %vm526 = vcmp.eq.f32.partialorder %v170, 0.0
        %v527 = vand.u32 %v170, 2147483648
        %v528 = vsel %vm526, %v527, %v525
        %v529 = vrsqrt.pop %v171
        %v530 = vmul.f32 %v171, %v529
        %vm531 = vcmp.eq.f32.partialorder %v171, inf
        %v532 = vsel %vm531, %v171, %v530
        %vm533 = vcmp.eq.f32.partialorder %v171, 0.0
        %v534 = vand.u32 %v171, 2147483648
        %v535 = vsel %vm533, %v534, %v532
        %v536 = vrsqrt.pop %v172
        %v537 = vmul.f32 %v172, %v536
        %vm538 = vcmp.eq.f32.partialorder %v172, inf
        %v539 = vsel %vm538, %v172, %v537
        %vm540 = vcmp.eq.f32.partialorder %v172, 0.0
        %v541 = vand.u32 %v172, 2147483648
        %v542 = vsel %vm540, %v541, %v539
        %v543 = vrsqrt.pop %v173
        %v544 = vmul.f32 %v173, %v543
        %vm545 = vcmp.eq.f32.partialorder %v173, inf
        %v546 = vsel %vm545, %v173, %v544
        %vm547 = vcmp.eq.f32.partialorder %v173, 0.0
        %v548 = vand.u32 %v173, 2147483648
        %v549 = vsel %vm547, %v548, %v546
        %v550 = vrsqrt.pop %v174
        %v551 = vmul.f32 %v174, %v550
        %vm552 = vcmp.eq.f32.partialorder %v174, inf
        %v553 = vsel %vm552, %v174, %v551
        %vm554 = vcmp.eq.f32.partialorder %v174, 0.0
        %v555 = vand.u32 %v174, 2147483648
        %v556 = vsel %vm554, %v555, %v553
        %v557 = vrsqrt.pop %v175
        %v558 = vmul.f32 %v175, %v557
        %vm559 = vcmp.eq.f32.partialorder %v175, inf
        %v560 = vsel %vm559, %v175, %v558
        %vm561 = vcmp.eq.f32.partialorder %v175, 0.0
        %v562 = vand.u32 %v175, 2147483648
        %v563 = vsel %vm561, %v562, %v560
        %v564 = vrsqrt.pop %v176
        %v565 = vmul.f32 %v176, %v564
        %vm566 = vcmp.eq.f32.partialorder %v176, inf
        %v567 = vsel %vm566, %v176, %v565
        %vm568 = vcmp.eq.f32.partialorder %v176, 0.0
        %v569 = vand.u32 %v176, 2147483648
        %v570 = vsel %vm568, %v569, %v567
        %v571 = vrsqrt.pop %v177
        %v572 = vmul.f32 %v177, %v571
        %vm573 = vcmp.eq.f32.partialorder %v177, inf
        %v574 = vsel %vm573, %v177, %v572
        %vm575 = vcmp.eq.f32.partialorder %v177, 0.0
        %v576 = vand.u32 %v177, 2147483648
        %v577 = vsel %vm575, %v576, %v574
        %v578 = vrsqrt.pop %v178
        %v579 = vmul.f32 %v178, %v578
        %vm580 = vcmp.eq.f32.partialorder %v178, inf
        %v581 = vsel %vm580, %v178, %v579
        %vm582 = vcmp.eq.f32.partialorder %v178, 0.0
        %v583 = vand.u32 %v178, 2147483648
        %v584 = vsel %vm582, %v583, %v581
        %v585 = vrsqrt.pop %v179
        %v586 = vmul.f32 %v179, %v585
        %vm587 = vcmp.eq.f32.partialorder %v179, inf
        %v588 = vsel %vm587, %v179, %v586
        %vm589 = vcmp.eq.f32.partialorder %v179, 0.0
        %v590 = vand.u32 %v179, 2147483648
        %v591 = vsel %vm589, %v590, %v588
        %v592 = vrsqrt.pop %v180
        %v593 = vmul.f32 %v180, %v592
        %vm594 = vcmp.eq.f32.partialorder %v180, inf
        %v595 = vsel %vm594, %v180, %v593
        %vm596 = vcmp.eq.f32.partialorder %v180, 0.0
        %v597 = vand.u32 %v180, 2147483648
        %v598 = vsel %vm596, %v597, %v595
        %v599 = vrsqrt.pop %v181
        %v600 = vmul.f32 %v181, %v599
        %vm601 = vcmp.eq.f32.partialorder %v181, inf
        %v602 = vsel %vm601, %v181, %v600
        %vm603 = vcmp.eq.f32.partialorder %v181, 0.0
        %v604 = vand.u32 %v181, 2147483648
        %v605 = vsel %vm603, %v604, %v602
        %v606 = vrsqrt.pop %v182
        %v607 = vmul.f32 %v182, %v606
        %vm608 = vcmp.eq.f32.partialorder %v182, inf
        %v609 = vsel %vm608, %v182, %v607
        %vm610 = vcmp.eq.f32.partialorder %v182, 0.0
        %v611 = vand.u32 %v182, 2147483648
        %v612 = vsel %vm610, %v611, %v609
        %v613 = vrsqrt.pop %v183
        %v614 = vmul.f32 %v183, %v613
        %vm615 = vcmp.eq.f32.partialorder %v183, inf
        %v616 = vsel %vm615, %v183, %v614
        %vm617 = vcmp.eq.f32.partialorder %v183, 0.0
        %v618 = vand.u32 %v183, 2147483648
        %v619 = vsel %vm617, %v618, %v616
        %v620 = vrsqrt.pop %v184
        %v621 = vmul.f32 %v184, %v620
        %vm622 = vcmp.eq.f32.partialorder %v184, inf
        %v623 = vsel %vm622, %v184, %v621
        %vm624 = vcmp.eq.f32.partialorder %v184, 0.0
        %v625 = vand.u32 %v184, 2147483648
        %v626 = vsel %vm624, %v625, %v623
        %v627 = vrsqrt.pop %v185
        %v628 = vmul.f32 %v185, %v627
        %vm629 = vcmp.eq.f32.partialorder %v185, inf
        %v630 = vsel %vm629, %v185, %v628
        %vm631 = vcmp.eq.f32.partialorder %v185, 0.0
        %v632 = vand.u32 %v185, 2147483648
        %v633 = vsel %vm631, %v632, %v630
        %v634 = vrsqrt.pop %v186
        %v635 = vmul.f32 %v186, %v634
        %vm636 = vcmp.eq.f32.partialorder %v186, inf
        %v637 = vsel %vm636, %v186, %v635
        %vm638 = vcmp.eq.f32.partialorder %v186, 0.0
        %v639 = vand.u32 %v186, 2147483648
        %v640 = vsel %vm638, %v639, %v637
        %v641 = vrsqrt.pop %v187
        %v642 = vmul.f32 %v187, %v641
        %vm643 = vcmp.eq.f32.partialorder %v187, inf
        %v644 = vsel %vm643, %v187, %v642
        %vm645 = vcmp.eq.f32.partialorder %v187, 0.0
        %v646 = vand.u32 %v187, 2147483648
        %v647 = vsel %vm645, %v646, %v644
        %v648 = vrsqrt.pop %v188
        %v649 = vmul.f32 %v188, %v648
        %vm650 = vcmp.eq.f32.partialorder %v188, inf
        %v651 = vsel %vm650, %v188, %v649
        %vm652 = vcmp.eq.f32.partialorder %v188, 0.0
        %v653 = vand.u32 %v188, 2147483648
        %v654 = vsel %vm652, %v653, %v651
        %v655 = vrsqrt.pop %v189
        %v656 = vmul.f32 %v189, %v655
        %vm657 = vcmp.eq.f32.partialorder %v189, inf
        %v658 = vsel %vm657, %v189, %v656
        %vm659 = vcmp.eq.f32.partialorder %v189, 0.0
        %v660 = vand.u32 %v189, 2147483648
        %v661 = vsel %vm659, %v660, %v658
        %v662 = vrsqrt.pop %v190
        %v663 = vmul.f32 %v190, %v662
        %vm664 = vcmp.eq.f32.partialorder %v190, inf
        %v665 = vsel %vm664, %v190, %v663
        %vm666 = vcmp.eq.f32.partialorder %v190, 0.0
        %v667 = vand.u32 %v190, 2147483648
        %v668 = vsel %vm666, %v667, %v665
        %v669 = vrsqrt.pop %v191
        %v670 = vmul.f32 %v191, %v669
        %vm671 = vcmp.eq.f32.partialorder %v191, inf
        %v672 = vsel %vm671, %v191, %v670
        %vm673 = vcmp.eq.f32.partialorder %v191, 0.0
        %v674 = vand.u32 %v191, 2147483648
        %v675 = vsel %vm673, %v674, %v672
        %v676 = vrsqrt.pop %v192
        %v677 = vmul.f32 %v192, %v676
        %vm678 = vcmp.eq.f32.partialorder %v192, inf
        %v679 = vsel %vm678, %v192, %v677
        %vm680 = vcmp.eq.f32.partialorder %v192, 0.0
        %v681 = vand.u32 %v192, 2147483648
        %v682 = vsel %vm680, %v681, %v679
        %v683 = vrsqrt.pop %v193
        %v684 = vmul.f32 %v193, %v683
        %vm685 = vcmp.eq.f32.partialorder %v193, inf
        %v686 = vsel %vm685, %v193, %v684
        %vm687 = vcmp.eq.f32.partialorder %v193, 0.0
        %v688 = vand.u32 %v193, 2147483648
        %v689 = vsel %vm687, %v688, %v686
        %v690 = vrsqrt.pop %v194
        %v691 = vmul.f32 %v194, %v690
        %vm692 = vcmp.eq.f32.partialorder %v194, inf
        %v693 = vsel %vm692, %v194, %v691
        %vm694 = vcmp.eq.f32.partialorder %v194, 0.0
        %v695 = vand.u32 %v194, 2147483648
        %v696 = vsel %vm694, %v695, %v693
        %v697 = vrsqrt.pop %v195
        %v698 = vmul.f32 %v195, %v697
        %vm699 = vcmp.eq.f32.partialorder %v195, inf
        %v700 = vsel %vm699, %v195, %v698
        %vm701 = vcmp.eq.f32.partialorder %v195, 0.0
        %v702 = vand.u32 %v195, 2147483648
        %v703 = vsel %vm701, %v702, %v700
        %v704 = vrsqrt.pop %v196
        %v705 = vmul.f32 %v196, %v704
        %vm706 = vcmp.eq.f32.partialorder %v196, inf
        %v707 = vsel %vm706, %v196, %v705
        %vm708 = vcmp.eq.f32.partialorder %v196, 0.0
        %v709 = vand.u32 %v196, 2147483648
        %v710 = vsel %vm708, %v709, %v707
        %v711 = vrsqrt.pop %v197
        %v712 = vmul.f32 %v197, %v711
        %vm713 = vcmp.eq.f32.partialorder %v197, inf
        %v714 = vsel %vm713, %v197, %v712
        %vm715 = vcmp.eq.f32.partialorder %v197, 0.0
        %v716 = vand.u32 %v197, 2147483648
        %v717 = vsel %vm715, %v716, %v714
        %v718 = vrsqrt.pop %v198
        %v719 = vmul.f32 %v198, %v718
        %vm720 = vcmp.eq.f32.partialorder %v198, inf
        %v721 = vsel %vm720, %v198, %v719
        %vm722 = vcmp.eq.f32.partialorder %v198, 0.0
        %v723 = vand.u32 %v198, 2147483648
        %v724 = vsel %vm722, %v723, %v721
        %v725 = vrsqrt.pop %v199
        %v726 = vmul.f32 %v199, %v725
        %vm727 = vcmp.eq.f32.partialorder %v199, inf
        %v728 = vsel %vm727, %v199, %v726
        %vm729 = vcmp.eq.f32.partialorder %v199, 0.0
        %v730 = vand.u32 %v199, 2147483648
        %v731 = vsel %vm729, %v730, %v728
        %v732 = vrsqrt.pop %v200
        %v733 = vmul.f32 %v200, %v732
        %vm734 = vcmp.eq.f32.partialorder %v200, inf
        %v735 = vsel %vm734, %v200, %v733
        %vm736 = vcmp.eq.f32.partialorder %v200, 0.0
        %v737 = vand.u32 %v200, 2147483648
        %v738 = vsel %vm736, %v737, %v735
        %v739 = vrsqrt.pop %v201
        %v740 = vmul.f32 %v201, %v739
        %vm741 = vcmp.eq.f32.partialorder %v201, inf
        %v742 = vsel %vm741, %v201, %v740
        %vm743 = vcmp.eq.f32.partialorder %v201, 0.0
        %v744 = vand.u32 %v201, 2147483648
        %v745 = vsel %vm743, %v744, %v742
        %v746 = vrsqrt.pop %v202
        %v747 = vmul.f32 %v202, %v746
        %vm748 = vcmp.eq.f32.partialorder %v202, inf
        %v749 = vsel %vm748, %v202, %v747
        %vm750 = vcmp.eq.f32.partialorder %v202, 0.0
        %v751 = vand.u32 %v202, 2147483648
        %v752 = vsel %vm750, %v751, %v749
        %v753 = vrsqrt.pop %v203
        %v754 = vmul.f32 %v203, %v753
        %vm755 = vcmp.eq.f32.partialorder %v203, inf
        %v756 = vsel %vm755, %v203, %v754
        %vm757 = vcmp.eq.f32.partialorder %v203, 0.0
        %v758 = vand.u32 %v203, 2147483648
        %v759 = vsel %vm757, %v758, %v756
        %v760 = vrsqrt.pop %v204
        %v761 = vmul.f32 %v204, %v760
        %vm762 = vcmp.eq.f32.partialorder %v204, inf
        %v763 = vsel %vm762, %v204, %v761
        %vm764 = vcmp.eq.f32.partialorder %v204, 0.0
        %v765 = vand.u32 %v204, 2147483648
        %v766 = vsel %vm764, %v765, %v763
        %v767 = vrsqrt.pop %v205
        %v768 = vmul.f32 %v205, %v767
        %vm769 = vcmp.eq.f32.partialorder %v205, inf
        %v770 = vsel %vm769, %v205, %v768
        %vm771 = vcmp.eq.f32.partialorder %v205, 0.0
        %v772 = vand.u32 %v205, 2147483648
        %v773 = vsel %vm771, %v772, %v770
        %v774 = vrsqrt.pop %v206
        %v775 = vmul.f32 %v206, %v774
        %vm776 = vcmp.eq.f32.partialorder %v206, inf
        %v777 = vsel %vm776, %v206, %v775
        %vm778 = vcmp.eq.f32.partialorder %v206, 0.0
        %v779 = vand.u32 %v206, 2147483648
        %v780 = vsel %vm778, %v779, %v777
        %v781 = vrsqrt.pop %v207
        %v782 = vmul.f32 %v207, %v781
        %vm783 = vcmp.eq.f32.partialorder %v207, inf
        %v784 = vsel %vm783, %v207, %v782
        %vm785 = vcmp.eq.f32.partialorder %v207, 0.0
        %v786 = vand.u32 %v207, 2147483648
        %v787 = vsel %vm785, %v786, %v784
        %v788 = vrsqrt.pop %v208
        %v789 = vmul.f32 %v208, %v788
        %vm790 = vcmp.eq.f32.partialorder %v208, inf
        %v791 = vsel %vm790, %v208, %v789
        %vm792 = vcmp.eq.f32.partialorder %v208, 0.0
        %v793 = vand.u32 %v208, 2147483648
        %v794 = vsel %vm792, %v793, %v791
        %v795 = vrsqrt.pop %v209
        %v796 = vmul.f32 %v209, %v795
        %vm797 = vcmp.eq.f32.partialorder %v209, inf
        %v798 = vsel %vm797, %v209, %v796
        %vm799 = vcmp.eq.f32.partialorder %v209, 0.0
        %v800 = vand.u32 %v209, 2147483648
        %v801 = vsel %vm799, %v800, %v798
        %v802 = vrsqrt.pop %v210
        %v803 = vmul.f32 %v210, %v802
        %vm804 = vcmp.eq.f32.partialorder %v210, inf
        %v805 = vsel %vm804, %v210, %v803
        %vm806 = vcmp.eq.f32.partialorder %v210, 0.0
        %v807 = vand.u32 %v210, 2147483648
        %v808 = vsel %vm806, %v807, %v805
        %v809 = vrsqrt.pop %v211
        %v810 = vmul.f32 %v211, %v809
        %vm811 = vcmp.eq.f32.partialorder %v211, inf
        %v812 = vsel %vm811, %v211, %v810
        %vm813 = vcmp.eq.f32.partialorder %v211, 0.0
        %v814 = vand.u32 %v211, 2147483648
        %v815 = vsel %vm813, %v814, %v812
        %v816 = vrsqrt.pop %v212
        %v817 = vmul.f32 %v212, %v816
        %vm818 = vcmp.eq.f32.partialorder %v212, inf
        %v819 = vsel %vm818, %v212, %v817
        %vm820 = vcmp.eq.f32.partialorder %v212, 0.0
        %v821 = vand.u32 %v212, 2147483648
        %v822 = vsel %vm820, %v821, %v819
        %v823 = vrsqrt.pop %v213
        %v824 = vmul.f32 %v213, %v823
        %vm825 = vcmp.eq.f32.partialorder %v213, inf
        %v826 = vsel %vm825, %v213, %v824
        %vm827 = vcmp.eq.f32.partialorder %v213, 0.0
        %v828 = vand.u32 %v213, 2147483648
        %v829 = vsel %vm827, %v828, %v826
        %v830 = vrsqrt.pop %v214
        %v831 = vmul.f32 %v214, %v830
        %vm832 = vcmp.eq.f32.partialorder %v214, inf
        %v833 = vsel %vm832, %v214, %v831
        %vm834 = vcmp.eq.f32.partialorder %v214, 0.0
        %v835 = vand.u32 %v214, 2147483648
        %v836 = vsel %vm834, %v835, %v833
        %v837 = vrsqrt.pop %v215
        %v838 = vmul.f32 %v215, %v837
        %vm839 = vcmp.eq.f32.partialorder %v215, inf
        %v840 = vsel %vm839, %v215, %v838
        %vm841 = vcmp.eq.f32.partialorder %v215, 0.0
        %v842 = vand.u32 %v215, 2147483648
        %v843 = vsel %vm841, %v842, %v840
        %v844 = vrsqrt.pop %v216
        %v845 = vmul.f32 %v216, %v844
        %vm846 = vcmp.eq.f32.partialorder %v216, inf
        %v847 = vsel %vm846, %v216, %v845
        %vm848 = vcmp.eq.f32.partialorder %v216, 0.0
        %v849 = vand.u32 %v216, 2147483648
        %v850 = vsel %vm848, %v849, %v847
        %v851 = vrsqrt.pop %v217
        %v852 = vmul.f32 %v217, %v851
        %vm853 = vcmp.eq.f32.partialorder %v217, inf
        %v854 = vsel %vm853, %v217, %v852
        %vm855 = vcmp.eq.f32.partialorder %v217, 0.0
        %v856 = vand.u32 %v217, 2147483648
        %v857 = vsel %vm855, %v856, %v854
        %v858 = vrsqrt.pop %v218
        %v859 = vmul.f32 %v218, %v858
        %vm860 = vcmp.eq.f32.partialorder %v218, inf
        %v861 = vsel %vm860, %v218, %v859
        %vm862 = vcmp.eq.f32.partialorder %v218, 0.0
        %v863 = vand.u32 %v218, 2147483648
        %v864 = vsel %vm862, %v863, %v861
        %v865 = vrsqrt.pop %v219
        %v866 = vmul.f32 %v219, %v865
        %vm867 = vcmp.eq.f32.partialorder %v219, inf
        %v868 = vsel %vm867, %v219, %v866
        %vm869 = vcmp.eq.f32.partialorder %v219, 0.0
        %v870 = vand.u32 %v219, 2147483648
        %v871 = vsel %vm869, %v870, %v868
        %v872 = vrsqrt.pop %v220
        %v873 = vmul.f32 %v220, %v872
        %vm874 = vcmp.eq.f32.partialorder %v220, inf
        %v875 = vsel %vm874, %v220, %v873
        %vm876 = vcmp.eq.f32.partialorder %v220, 0.0
        %v877 = vand.u32 %v220, 2147483648
        %v878 = vsel %vm876, %v877, %v875
        %v879 = vrsqrt.pop %v221
        %v880 = vmul.f32 %v221, %v879
        %vm881 = vcmp.eq.f32.partialorder %v221, inf
        %v882 = vsel %vm881, %v221, %v880
        %vm883 = vcmp.eq.f32.partialorder %v221, 0.0
        %v884 = vand.u32 %v221, 2147483648
        %v885 = vsel %vm883, %v884, %v882
        %v886 = vrsqrt.pop %v222
        %v887 = vmul.f32 %v222, %v886
        %vm888 = vcmp.eq.f32.partialorder %v222, inf
        %v889 = vsel %vm888, %v222, %v887
        %vm890 = vcmp.eq.f32.partialorder %v222, 0.0
        %v891 = vand.u32 %v222, 2147483648
        %v892 = vsel %vm890, %v891, %v889
        %v893 = vrsqrt.pop %v223
        %v894 = vmul.f32 %v223, %v893
        %vm895 = vcmp.eq.f32.partialorder %v223, inf
        %v896 = vsel %vm895, %v223, %v894
        %vm897 = vcmp.eq.f32.partialorder %v223, 0.0
        %v898 = vand.u32 %v223, 2147483648
        %v899 = vsel %vm897, %v898, %v896
        %v900 = vrsqrt.pop %v224
        %v901 = vmul.f32 %v224, %v900
        %vm902 = vcmp.eq.f32.partialorder %v224, inf
        %v903 = vsel %vm902, %v224, %v901
        %vm904 = vcmp.eq.f32.partialorder %v224, 0.0
        %v905 = vand.u32 %v224, 2147483648
        %v906 = vsel %vm904, %v905, %v903
        %v907 = vrsqrt.pop %v225
        %v908 = vmul.f32 %v225, %v907
        %vm909 = vcmp.eq.f32.partialorder %v225, inf
        %v910 = vsel %vm909, %v225, %v908
        %vm911 = vcmp.eq.f32.partialorder %v225, 0.0
        %v912 = vand.u32 %v225, 2147483648
        %v913 = vsel %vm911, %v912, %v910
        %v914 = vrsqrt.pop %v226
        %v915 = vmul.f32 %v226, %v914
        %vm916 = vcmp.eq.f32.partialorder %v226, inf
        %v917 = vsel %vm916, %v226, %v915
        %vm918 = vcmp.eq.f32.partialorder %v226, 0.0
        %v919 = vand.u32 %v226, 2147483648
        %v920 = vsel %vm918, %v919, %v917
        %v921 = vrsqrt.pop %v227
        %v922 = vmul.f32 %v227, %v921
        %vm923 = vcmp.eq.f32.partialorder %v227, inf
        %v924 = vsel %vm923, %v227, %v922
        %vm925 = vcmp.eq.f32.partialorder %v227, 0.0
        %v926 = vand.u32 %v227, 2147483648
        %v927 = vsel %vm925, %v926, %v924
        %v928 = vrsqrt.pop %v228
        %v929 = vmul.f32 %v228, %v928
        %vm930 = vcmp.eq.f32.partialorder %v228, inf
        %v931 = vsel %vm930, %v228, %v929
        %vm932 = vcmp.eq.f32.partialorder %v228, 0.0
        %v933 = vand.u32 %v228, 2147483648
        %v934 = vsel %vm932, %v933, %v931
        %v935 = vrsqrt.pop %v229
        %v936 = vmul.f32 %v229, %v935
        %vm937 = vcmp.eq.f32.partialorder %v229, inf
        %v938 = vsel %vm937, %v229, %v936
        %vm939 = vcmp.eq.f32.partialorder %v229, 0.0
        %v940 = vand.u32 %v229, 2147483648
        %v941 = vsel %vm939, %v940, %v938
        %v942 = vrsqrt.pop %v230
        %v943 = vmul.f32 %v230, %v942
        %vm944 = vcmp.eq.f32.partialorder %v230, inf
        %v945 = vsel %vm944, %v230, %v943
        %vm946 = vcmp.eq.f32.partialorder %v230, 0.0
        %v947 = vand.u32 %v230, 2147483648
        %v948 = vsel %vm946, %v947, %v945
        %v949 = vrsqrt.pop %v231
        %v950 = vmul.f32 %v231, %v949
        %vm951 = vcmp.eq.f32.partialorder %v231, inf
        %v952 = vsel %vm951, %v231, %v950
        %vm953 = vcmp.eq.f32.partialorder %v231, 0.0
        %v954 = vand.u32 %v231, 2147483648
        %v955 = vsel %vm953, %v954, %v952
        %v956 = vrsqrt.pop %v232
        %v957 = vmul.f32 %v232, %v956
        %vm958 = vcmp.eq.f32.partialorder %v232, inf
        %v959 = vsel %vm958, %v232, %v957
        %vm960 = vcmp.eq.f32.partialorder %v232, 0.0
        %v961 = vand.u32 %v232, 2147483648
        %v962 = vsel %vm960, %v961, %v959
        %v963 = vrsqrt.pop %v233
        %v964 = vmul.f32 %v233, %v963
        %vm965 = vcmp.eq.f32.partialorder %v233, inf
        %v966 = vsel %vm965, %v233, %v964
        %vm967 = vcmp.eq.f32.partialorder %v233, 0.0
        %v968 = vand.u32 %v233, 2147483648
        %v969 = vsel %vm967, %v968, %v966
        %v970 = vrsqrt.pop %v234
        %v971 = vmul.f32 %v234, %v970
        %vm972 = vcmp.eq.f32.partialorder %v234, inf
        %v973 = vsel %vm972, %v234, %v971
        %vm974 = vcmp.eq.f32.partialorder %v234, 0.0
        %v975 = vand.u32 %v234, 2147483648
        %v976 = vsel %vm974, %v975, %v973
        %v977 = vrsqrt.pop %v235
        %v978 = vmul.f32 %v235, %v977
        %vm979 = vcmp.eq.f32.partialorder %v235, inf
        %v980 = vsel %vm979, %v235, %v978
        %vm981 = vcmp.eq.f32.partialorder %v235, 0.0
        %v982 = vand.u32 %v235, 2147483648
        %v983 = vsel %vm981, %v982, %v980
        %v984 = vrsqrt.pop %v236
        %v985 = vmul.f32 %v236, %v984
        %vm986 = vcmp.eq.f32.partialorder %v236, inf
        %v987 = vsel %vm986, %v236, %v985
        %vm988 = vcmp.eq.f32.partialorder %v236, 0.0
        %v989 = vand.u32 %v236, 2147483648
        %v990 = vsel %vm988, %v989, %v987
        %v991 = vrsqrt.pop %v237
        %v992 = vmul.f32 %v237, %v991
        %vm993 = vcmp.eq.f32.partialorder %v237, inf
        %v994 = vsel %vm993, %v237, %v992
        %vm995 = vcmp.eq.f32.partialorder %v237, 0.0
        %v996 = vand.u32 %v237, 2147483648
        %v997 = vsel %vm995, %v996, %v994
        %v998 = vrsqrt.pop %v238
        %v999 = vmul.f32 %v238, %v998
        %vm1000 = vcmp.eq.f32.partialorder %v238, inf
        %v1001 = vsel %vm1000, %v238, %v999
        %vm1002 = vcmp.eq.f32.partialorder %v238, 0.0
        %v1003 = vand.u32 %v238, 2147483648
        %v1004 = vsel %vm1002, %v1003, %v1001
        %v1005 = vrsqrt.pop %v239
        %v1006 = vmul.f32 %v239, %v1005
        %vm1007 = vcmp.eq.f32.partialorder %v239, inf
        %v1008 = vsel %vm1007, %v239, %v1006
        %vm1009 = vcmp.eq.f32.partialorder %v239, 0.0
        %v1010 = vand.u32 %v239, 2147483648
        %v1011 = vsel %vm1009, %v1010, %v1008
        %v1012 = vrsqrt.pop %v240
        %v1013 = vmul.f32 %v240, %v1012
        %vm1014 = vcmp.eq.f32.partialorder %v240, inf
        %v1015 = vsel %vm1014, %v240, %v1013
        %vm1016 = vcmp.eq.f32.partialorder %v240, 0.0
        %v1017 = vand.u32 %v240, 2147483648
        %v1018 = vsel %vm1016, %v1017, %v1015
        %v1019 = vrsqrt.pop %v241
        %v1020 = vmul.f32 %v241, %v1019
        %vm1021 = vcmp.eq.f32.partialorder %v241, inf
        %v1022 = vsel %vm1021, %v241, %v1020
        %vm1023 = vcmp.eq.f32.partialorder %v241, 0.0
        %v1024 = vand.u32 %v241, 2147483648
        %v1025 = vsel %vm1023, %v1024, %v1022
        %v1026 = vrsqrt.pop %v242
        %v1027 = vmul.f32 %v242, %v1026
        %vm1028 = vcmp.eq.f32.partialorder %v242, inf
        %v1029 = vsel %vm1028, %v242, %v1027
        %vm1030 = vcmp.eq.f32.partialorder %v242, 0.0
        %v1031 = vand.u32 %v242, 2147483648
        %v1032 = vsel %vm1030, %v1031, %v1029
        %v1033 = vrsqrt.pop %v243
        %v1034 = vmul.f32 %v243, %v1033
        %vm1035 = vcmp.eq.f32.partialorder %v243, inf
        %v1036 = vsel %vm1035, %v243, %v1034
        %vm1037 = vcmp.eq.f32.partialorder %v243, 0.0
        %v1038 = vand.u32 %v243, 2147483648
        %v1039 = vsel %vm1037, %v1038, %v1036
        %v1040 = vrsqrt.pop %v244
        %v1041 = vmul.f32 %v244, %v1040
        %vm1042 = vcmp.eq.f32.partialorder %v244, inf
        %v1043 = vsel %vm1042, %v244, %v1041
        %vm1044 = vcmp.eq.f32.partialorder %v244, 0.0
        %v1045 = vand.u32 %v244, 2147483648
        %v1046 = vsel %vm1044, %v1045, %v1043
        %v1047 = vrsqrt.pop %v245
        %v1048 = vmul.f32 %v245, %v1047
        %vm1049 = vcmp.eq.f32.partialorder %v245, inf
        %v1050 = vsel %vm1049, %v245, %v1048
        %vm1051 = vcmp.eq.f32.partialorder %v245, 0.0
        %v1052 = vand.u32 %v245, 2147483648
        %v1053 = vsel %vm1051, %v1052, %v1050
        %v1054 = vrsqrt.pop %v246
        %v1055 = vmul.f32 %v246, %v1054
        %vm1056 = vcmp.eq.f32.partialorder %v246, inf
        %v1057 = vsel %vm1056, %v246, %v1055
        %vm1058 = vcmp.eq.f32.partialorder %v246, 0.0
        %v1059 = vand.u32 %v246, 2147483648
        %v1060 = vsel %vm1058, %v1059, %v1057
        %v1061 = vrsqrt.pop %v247
        %v1062 = vmul.f32 %v247, %v1061
        %vm1063 = vcmp.eq.f32.partialorder %v247, inf
        %v1064 = vsel %vm1063, %v247, %v1062
        %vm1065 = vcmp.eq.f32.partialorder %v247, 0.0
        %v1066 = vand.u32 %v247, 2147483648
        %v1067 = vsel %vm1065, %v1066, %v1064
        %v1068 = vrsqrt.pop %v248
        %v1069 = vmul.f32 %v248, %v1068
        %vm1070 = vcmp.eq.f32.partialorder %v248, inf
        %v1071 = vsel %vm1070, %v248, %v1069
        %vm1072 = vcmp.eq.f32.partialorder %v248, 0.0
        %v1073 = vand.u32 %v248, 2147483648
        %v1074 = vsel %vm1072, %v1073, %v1071
        %v1075 = vrsqrt.pop %v249
        %v1076 = vmul.f32 %v249, %v1075
        %vm1077 = vcmp.eq.f32.partialorder %v249, inf
        %v1078 = vsel %vm1077, %v249, %v1076
        %vm1079 = vcmp.eq.f32.partialorder %v249, 0.0
        %v1080 = vand.u32 %v249, 2147483648
        %v1081 = vsel %vm1079, %v1080, %v1078
        %v1082 = vrsqrt.pop %v250
        %v1083 = vmul.f32 %v250, %v1082
        %vm1084 = vcmp.eq.f32.partialorder %v250, inf
        %v1085 = vsel %vm1084, %v250, %v1083
        %vm1086 = vcmp.eq.f32.partialorder %v250, 0.0
        %v1087 = vand.u32 %v250, 2147483648
        %v1088 = vsel %vm1086, %v1087, %v1085
        %v1089 = vrsqrt.pop %v251
        %v1090 = vmul.f32 %v251, %v1089
        %vm1091 = vcmp.eq.f32.partialorder %v251, inf
        %v1092 = vsel %vm1091, %v251, %v1090
        %vm1093 = vcmp.eq.f32.partialorder %v251, 0.0
        %v1094 = vand.u32 %v251, 2147483648
        %v1095 = vsel %vm1093, %v1094, %v1092
        %v1096 = vrsqrt.pop %v252
        %v1097 = vmul.f32 %v252, %v1096
        %vm1098 = vcmp.eq.f32.partialorder %v252, inf
        %v1099 = vsel %vm1098, %v252, %v1097
        %vm1100 = vcmp.eq.f32.partialorder %v252, 0.0
        %v1101 = vand.u32 %v252, 2147483648
        %v1102 = vsel %vm1100, %v1101, %v1099
        %v1103 = vrsqrt.pop %v253
        %v1104 = vmul.f32 %v253, %v1103
        %vm1105 = vcmp.eq.f32.partialorder %v253, inf
        %v1106 = vsel %vm1105, %v253, %v1104
        %vm1107 = vcmp.eq.f32.partialorder %v253, 0.0
        %v1108 = vand.u32 %v253, 2147483648
        %v1109 = vsel %vm1107, %v1108, %v1106
        %v1110 = vrsqrt.pop %v254
        %v1111 = vmul.f32 %v254, %v1110
        %vm1112 = vcmp.eq.f32.partialorder %v254, inf
        %v1113 = vsel %vm1112, %v254, %v1111
        %vm1114 = vcmp.eq.f32.partialorder %v254, 0.0
        %v1115 = vand.u32 %v254, 2147483648
        %v1116 = vsel %vm1114, %v1115, %v1113
        %v1117 = vrsqrt.pop %v255
        %v1118 = vmul.f32 %v255, %v1117
        %vm1119 = vcmp.eq.f32.partialorder %v255, inf
        %v1120 = vsel %vm1119, %v255, %v1118
        %vm1121 = vcmp.eq.f32.partialorder %v255, 0.0
        %v1122 = vand.u32 %v255, 2147483648
        %v1123 = vsel %vm1121, %v1122, %v1120
        %v1124 = vrsqrt.pop %v256
        %v1125 = vmul.f32 %v256, %v1124
        %vm1126 = vcmp.eq.f32.partialorder %v256, inf
        %v1127 = vsel %vm1126, %v256, %v1125
        %vm1128 = vcmp.eq.f32.partialorder %v256, 0.0
        %v1129 = vand.u32 %v256, 2147483648
        %v1130 = vsel %vm1128, %v1129, %v1127
        %v1131 = vrsqrt.pop %v257
        %v1132 = vmul.f32 %v257, %v1131
        %vm1133 = vcmp.eq.f32.partialorder %v257, inf
        %v1134 = vsel %vm1133, %v257, %v1132
        %vm1135 = vcmp.eq.f32.partialorder %v257, 0.0
        %v1136 = vand.u32 %v257, 2147483648
        %v1137 = vsel %vm1135, %v1136, %v1134
        %v1138 = vrsqrt.pop %v258
        %v1139 = vmul.f32 %v258, %v1138
        %vm1140 = vcmp.eq.f32.partialorder %v258, inf
        %v1141 = vsel %vm1140, %v258, %v1139
        %vm1142 = vcmp.eq.f32.partialorder %v258, 0.0
        %v1143 = vand.u32 %v258, 2147483648
        %v1144 = vsel %vm1142, %v1143, %v1141
        %v1145 = vrsqrt.pop %v259
        %v1146 = vmul.f32 %v259, %v1145
        %vm1147 = vcmp.eq.f32.partialorder %v259, inf
        %v1148 = vsel %vm1147, %v259, %v1146
        %vm1149 = vcmp.eq.f32.partialorder %v259, 0.0
        %v1150 = vand.u32 %v259, 2147483648
        %v1151 = vsel %vm1149, %v1150, %v1148
        %v1152 = vrsqrt.pop %v260
        %v1153 = vmul.f32 %v260, %v1152
        %vm1154 = vcmp.eq.f32.partialorder %v260, inf
        %v1155 = vsel %vm1154, %v260, %v1153
        %vm1156 = vcmp.eq.f32.partialorder %v260, 0.0
        %v1157 = vand.u32 %v260, 2147483648
        %v1158 = vsel %vm1156, %v1157, %v1155
        %v1159 = vrsqrt.pop %v261
        %v1160 = vmul.f32 %v261, %v1159
        %vm1161 = vcmp.eq.f32.partialorder %v261, inf
        %v1162 = vsel %vm1161, %v261, %v1160
        %vm1163 = vcmp.eq.f32.partialorder %v261, 0.0
        %v1164 = vand.u32 %v261, 2147483648
        %v1165 = vsel %vm1163, %v1164, %v1162
        %v1166 = vrsqrt.pop %v262
        %v1167 = vmul.f32 %v262, %v1166
        %vm1168 = vcmp.eq.f32.partialorder %v262, inf
        %v1169 = vsel %vm1168, %v262, %v1167
        %vm1170 = vcmp.eq.f32.partialorder %v262, 0.0
        %v1171 = vand.u32 %v262, 2147483648
        %v1172 = vsel %vm1170, %v1171, %v1169
        %v1173 = vrsqrt.pop %v263
        %v1174 = vmul.f32 %v263, %v1173
        %vm1175 = vcmp.eq.f32.partialorder %v263, inf
        %v1176 = vsel %vm1175, %v263, %v1174
        %vm1177 = vcmp.eq.f32.partialorder %v263, 0.0
        %v1178 = vand.u32 %v263, 2147483648
        %v1179 = vsel %vm1177, %v1178, %v1176
        %v1180 = vrsqrt.pop %v264
        %v1181 = vmul.f32 %v264, %v1180
        %vm1182 = vcmp.eq.f32.partialorder %v264, inf
        %v1183 = vsel %vm1182, %v264, %v1181
        %vm1184 = vcmp.eq.f32.partialorder %v264, 0.0
        %v1185 = vand.u32 %v264, 2147483648
        %v1186 = vsel %vm1184, %v1185, %v1183
        %v1187 = vrsqrt.pop %v265
        %v1188 = vmul.f32 %v265, %v1187
        %vm1189 = vcmp.eq.f32.partialorder %v265, inf
        %v1190 = vsel %vm1189, %v265, %v1188
        %vm1191 = vcmp.eq.f32.partialorder %v265, 0.0
        %v1192 = vand.u32 %v265, 2147483648
        %v1193 = vsel %vm1191, %v1192, %v1190
        %v1194 = vrsqrt.pop %v266
        %v1195 = vmul.f32 %v266, %v1194
        %vm1196 = vcmp.eq.f32.partialorder %v266, inf
        %v1197 = vsel %vm1196, %v266, %v1195
        %vm1198 = vcmp.eq.f32.partialorder %v266, 0.0
        %v1199 = vand.u32 %v266, 2147483648
        %v1200 = vsel %vm1198, %v1199, %v1197
        %v1201 = vrsqrt.pop %v267
        %v1202 = vmul.f32 %v267, %v1201
        %vm1203 = vcmp.eq.f32.partialorder %v267, inf
        %v1204 = vsel %vm1203, %v267, %v1202
        %vm1205 = vcmp.eq.f32.partialorder %v267, 0.0
        %v1206 = vand.u32 %v267, 2147483648
        %v1207 = vsel %vm1205, %v1206, %v1204
        %v1208 = vrsqrt.pop %v268
        %v1209 = vmul.f32 %v268, %v1208
        %vm1210 = vcmp.eq.f32.partialorder %v268, inf
        %v1211 = vsel %vm1210, %v268, %v1209
        %vm1212 = vcmp.eq.f32.partialorder %v268, 0.0
        %v1213 = vand.u32 %v268, 2147483648
        %v1214 = vsel %vm1212, %v1213, %v1211
        %v1215 = vrsqrt.pop %v269
        %v1216 = vmul.f32 %v269, %v1215
        %vm1217 = vcmp.eq.f32.partialorder %v269, inf
        %v1218 = vsel %vm1217, %v269, %v1216
        %vm1219 = vcmp.eq.f32.partialorder %v269, 0.0
        %v1220 = vand.u32 %v269, 2147483648
        %v1221 = vsel %vm1219, %v1220, %v1218
        %v1222 = vrsqrt.pop %v270
        %v1223 = vmul.f32 %v270, %v1222
        %vm1224 = vcmp.eq.f32.partialorder %v270, inf
        %v1225 = vsel %vm1224, %v270, %v1223
        %vm1226 = vcmp.eq.f32.partialorder %v270, 0.0
        %v1227 = vand.u32 %v270, 2147483648
        %v1228 = vsel %vm1226, %v1227, %v1225
        %v1229 = vrsqrt.pop %v271
        %v1230 = vmul.f32 %v271, %v1229
        %vm1231 = vcmp.eq.f32.partialorder %v271, inf
        %v1232 = vsel %vm1231, %v271, %v1230
        %vm1233 = vcmp.eq.f32.partialorder %v271, 0.0
        %v1234 = vand.u32 %v271, 2147483648
        %v1235 = vsel %vm1233, %v1234, %v1232
        %v1236 = vrsqrt.pop %v272
        %v1237 = vmul.f32 %v272, %v1236
        %vm1238 = vcmp.eq.f32.partialorder %v272, inf
        %v1239 = vsel %vm1238, %v272, %v1237
        %vm1240 = vcmp.eq.f32.partialorder %v272, 0.0
        %v1241 = vand.u32 %v272, 2147483648
        %v1242 = vsel %vm1240, %v1241, %v1239
        %v1243 = vrsqrt.pop %v273
        %v1244 = vmul.f32 %v273, %v1243
        %vm1245 = vcmp.eq.f32.partialorder %v273, inf
        %v1246 = vsel %vm1245, %v273, %v1244
        %vm1247 = vcmp.eq.f32.partialorder %v273, 0.0
        %v1248 = vand.u32 %v273, 2147483648
        %v1249 = vsel %vm1247, %v1248, %v1246
        %v1250 = vrsqrt.pop %v274
        %v1251 = vmul.f32 %v274, %v1250
        %vm1252 = vcmp.eq.f32.partialorder %v274, inf
        %v1253 = vsel %vm1252, %v274, %v1251
        %vm1254 = vcmp.eq.f32.partialorder %v274, 0.0
        %v1255 = vand.u32 %v274, 2147483648
        %v1256 = vsel %vm1254, %v1255, %v1253
        %v1257 = vrsqrt.pop %v275
        %v1258 = vmul.f32 %v275, %v1257
        %vm1259 = vcmp.eq.f32.partialorder %v275, inf
        %v1260 = vsel %vm1259, %v275, %v1258
        %vm1261 = vcmp.eq.f32.partialorder %v275, 0.0
        %v1262 = vand.u32 %v275, 2147483648
        %v1263 = vsel %vm1261, %v1262, %v1260
        %v1264 = vrsqrt.pop %v276
        %v1265 = vmul.f32 %v276, %v1264
        %vm1266 = vcmp.eq.f32.partialorder %v276, inf
        %v1267 = vsel %vm1266, %v276, %v1265
        %vm1268 = vcmp.eq.f32.partialorder %v276, 0.0
        %v1269 = vand.u32 %v276, 2147483648
        %v1270 = vsel %vm1268, %v1269, %v1267
        %v1271 = vrsqrt.pop %v277
        %v1272 = vmul.f32 %v277, %v1271
        %vm1273 = vcmp.eq.f32.partialorder %v277, inf
        %v1274 = vsel %vm1273, %v277, %v1272
        %vm1275 = vcmp.eq.f32.partialorder %v277, 0.0
        %v1276 = vand.u32 %v277, 2147483648
        %v1277 = vsel %vm1275, %v1276, %v1274
        %v1278 = vrsqrt.pop %v278
        %v1279 = vmul.f32 %v278, %v1278
        %vm1280 = vcmp.eq.f32.partialorder %v278, inf
        %v1281 = vsel %vm1280, %v278, %v1279
        %vm1282 = vcmp.eq.f32.partialorder %v278, 0.0
        %v1283 = vand.u32 %v278, 2147483648
        %v1284 = vsel %vm1282, %v1283, %v1281
        %v1285 = vrsqrt.pop %v279
        %v1286 = vmul.f32 %v279, %v1285
        %vm1287 = vcmp.eq.f32.partialorder %v279, inf
        %v1288 = vsel %vm1287, %v279, %v1286
        %vm1289 = vcmp.eq.f32.partialorder %v279, 0.0
        %v1290 = vand.u32 %v279, 2147483648
        %v1291 = vsel %vm1289, %v1290, %v1288
        %v1292 = vrsqrt.pop %v280
        %v1293 = vmul.f32 %v280, %v1292
        %vm1294 = vcmp.eq.f32.partialorder %v280, inf
        %v1295 = vsel %vm1294, %v280, %v1293
        %vm1296 = vcmp.eq.f32.partialorder %v280, 0.0
        %v1297 = vand.u32 %v280, 2147483648
        %v1298 = vsel %vm1296, %v1297, %v1295
        %v1299 = vrsqrt.pop %v281
        %v1300 = vmul.f32 %v281, %v1299
        %vm1301 = vcmp.eq.f32.partialorder %v281, inf
        %v1302 = vsel %vm1301, %v281, %v1300
        %vm1303 = vcmp.eq.f32.partialorder %v281, 0.0
        %v1304 = vand.u32 %v281, 2147483648
        %v1305 = vsel %vm1303, %v1304, %v1302
        %v1306 = vrsqrt.pop %v282
        %v1307 = vmul.f32 %v282, %v1306
        %vm1308 = vcmp.eq.f32.partialorder %v282, inf
        %v1309 = vsel %vm1308, %v282, %v1307
        %vm1310 = vcmp.eq.f32.partialorder %v282, 0.0
        %v1311 = vand.u32 %v282, 2147483648
        %v1312 = vsel %vm1310, %v1311, %v1309
        %v1313 = vrsqrt.pop %v283
        %v1314 = vmul.f32 %v283, %v1313
        %vm1315 = vcmp.eq.f32.partialorder %v283, inf
        %v1316 = vsel %vm1315, %v283, %v1314
        %vm1317 = vcmp.eq.f32.partialorder %v283, 0.0
        %v1318 = vand.u32 %v283, 2147483648
        %v1319 = vsel %vm1317, %v1318, %v1316
        %v1320 = vrsqrt.pop %v284
        %v1321 = vmul.f32 %v284, %v1320
        %vm1322 = vcmp.eq.f32.partialorder %v284, inf
        %v1323 = vsel %vm1322, %v284, %v1321
        %vm1324 = vcmp.eq.f32.partialorder %v284, 0.0
        %v1325 = vand.u32 %v284, 2147483648
        %v1326 = vsel %vm1324, %v1325, %v1323
        %v1327 = vrsqrt.pop %v285
        %v1328 = vmul.f32 %v285, %v1327
        %vm1329 = vcmp.eq.f32.partialorder %v285, inf
        %v1330 = vsel %vm1329, %v285, %v1328
        %vm1331 = vcmp.eq.f32.partialorder %v285, 0.0
        %v1332 = vand.u32 %v285, 2147483648
        %v1333 = vsel %vm1331, %v1332, %v1330
        %v1334 = vrsqrt.pop %v286
        %v1335 = vmul.f32 %v286, %v1334
        %vm1336 = vcmp.eq.f32.partialorder %v286, inf
        %v1337 = vsel %vm1336, %v286, %v1335
        %vm1338 = vcmp.eq.f32.partialorder %v286, 0.0
        %v1339 = vand.u32 %v286, 2147483648
        %v1340 = vsel %vm1338, %v1339, %v1337
        %v1341 = vrsqrt.pop %v287
        %v1342 = vmul.f32 %v287, %v1341
        %vm1343 = vcmp.eq.f32.partialorder %v287, inf
        %v1344 = vsel %vm1343, %v287, %v1342
        %vm1345 = vcmp.eq.f32.partialorder %v287, 0.0
        %v1346 = vand.u32 %v287, 2147483648
        %v1347 = vsel %vm1345, %v1346, %v1344
        %v1348 = vrsqrt.pop %v288
        %v1349 = vmul.f32 %v288, %v1348
        %vm1350 = vcmp.eq.f32.partialorder %v288, inf
        %v1351 = vsel %vm1350, %v288, %v1349
        %vm1352 = vcmp.eq.f32.partialorder %v288, 0.0
        %v1353 = vand.u32 %v288, 2147483648
        %v1354 = vsel %vm1352, %v1353, %v1351
        %v1355 = vrsqrt.pop %v289
        %v1356 = vmul.f32 %v289, %v1355
        %vm1357 = vcmp.eq.f32.partialorder %v289, inf
        %v1358 = vsel %vm1357, %v289, %v1356
        %vm1359 = vcmp.eq.f32.partialorder %v289, 0.0
        %v1360 = vand.u32 %v289, 2147483648
        %v1361 = vsel %vm1359, %v1360, %v1358
        %v1362 = vrsqrt.pop %v290
        %v1363 = vmul.f32 %v290, %v1362
        %vm1364 = vcmp.eq.f32.partialorder %v290, inf
        %v1365 = vsel %vm1364, %v290, %v1363
        %vm1366 = vcmp.eq.f32.partialorder %v290, 0.0
        %v1367 = vand.u32 %v290, 2147483648
        %v1368 = vsel %vm1366, %v1367, %v1365
        %v1369 = vrsqrt.pop %v291
        %v1370 = vmul.f32 %v291, %v1369
        %vm1371 = vcmp.eq.f32.partialorder %v291, inf
        %v1372 = vsel %vm1371, %v291, %v1370
        %vm1373 = vcmp.eq.f32.partialorder %v291, 0.0
        %v1374 = vand.u32 %v291, 2147483648
        %v1375 = vsel %vm1373, %v1374, %v1372
        %v1376 = vrsqrt.pop %v292
        %v1377 = vmul.f32 %v292, %v1376
        %vm1378 = vcmp.eq.f32.partialorder %v292, inf
        %v1379 = vsel %vm1378, %v292, %v1377
        %vm1380 = vcmp.eq.f32.partialorder %v292, 0.0
        %v1381 = vand.u32 %v292, 2147483648
        %v1382 = vsel %vm1380, %v1381, %v1379
        %v1383 = vrsqrt.pop %v293
        %v1384 = vmul.f32 %v293, %v1383
        %vm1385 = vcmp.eq.f32.partialorder %v293, inf
        %v1386 = vsel %vm1385, %v293, %v1384
        %vm1387 = vcmp.eq.f32.partialorder %v293, 0.0
        %v1388 = vand.u32 %v293, 2147483648
        %v1389 = vsel %vm1387, %v1388, %v1386
        %v1390 = vrsqrt.pop %v294
        %v1391 = vmul.f32 %v294, %v1390
        %vm1392 = vcmp.eq.f32.partialorder %v294, inf
        %v1393 = vsel %vm1392, %v294, %v1391
        %vm1394 = vcmp.eq.f32.partialorder %v294, 0.0
        %v1395 = vand.u32 %v294, 2147483648
        %v1396 = vsel %vm1394, %v1395, %v1393
        %v1397 = vrsqrt.pop %v295
        %v1398 = vmul.f32 %v295, %v1397
        %vm1399 = vcmp.eq.f32.partialorder %v295, inf
        %v1400 = vsel %vm1399, %v295, %v1398
        %vm1401 = vcmp.eq.f32.partialorder %v295, 0.0
        %v1402 = vand.u32 %v295, 2147483648
        %v1403 = vsel %vm1401, %v1402, %v1400
        %v1404 = vrsqrt.pop %v296
        %v1405 = vmul.f32 %v296, %v1404
        %vm1406 = vcmp.eq.f32.partialorder %v296, inf
        %v1407 = vsel %vm1406, %v296, %v1405
        %vm1408 = vcmp.eq.f32.partialorder %v296, 0.0
        %v1409 = vand.u32 %v296, 2147483648
        %v1410 = vsel %vm1408, %v1409, %v1407
        %v1411 = vrsqrt.pop %v297
        %v1412 = vmul.f32 %v297, %v1411
        %vm1413 = vcmp.eq.f32.partialorder %v297, inf
        %v1414 = vsel %vm1413, %v297, %v1412
        %vm1415 = vcmp.eq.f32.partialorder %v297, 0.0
        %v1416 = vand.u32 %v297, 2147483648
        %v1417 = vsel %vm1415, %v1416, %v1414
        %v1418 = vrsqrt.pop %v298
        %v1419 = vmul.f32 %v298, %v1418
        %vm1420 = vcmp.eq.f32.partialorder %v298, inf
        %v1421 = vsel %vm1420, %v298, %v1419
        %vm1422 = vcmp.eq.f32.partialorder %v298, 0.0
        %v1423 = vand.u32 %v298, 2147483648
        %v1424 = vsel %vm1422, %v1423, %v1421
        %v1425 = vrsqrt.pop %v299
        %v1426 = vmul.f32 %v299, %v1425
        %vm1427 = vcmp.eq.f32.partialorder %v299, inf
        %v1428 = vsel %vm1427, %v299, %v1426
        %vm1429 = vcmp.eq.f32.partialorder %v299, 0.0
        %v1430 = vand.u32 %v299, 2147483648
        %v1431 = vsel %vm1429, %v1430, %v1428
        %v1432 = vrsqrt.pop %v300
        %v1433 = vmul.f32 %v300, %v1432
        %vm1434 = vcmp.eq.f32.partialorder %v300, inf
        %v1435 = vsel %vm1434, %v300, %v1433
        %vm1436 = vcmp.eq.f32.partialorder %v300, 0.0
        %v1437 = vand.u32 %v300, 2147483648
        %v1438 = vsel %vm1436, %v1437, %v1435
        %v1439 = vrsqrt.pop %v301
        %v1440 = vmul.f32 %v301, %v1439
        %vm1441 = vcmp.eq.f32.partialorder %v301, inf
        %v1442 = vsel %vm1441, %v301, %v1440
        %vm1443 = vcmp.eq.f32.partialorder %v301, 0.0
        %v1444 = vand.u32 %v301, 2147483648
        %v1445 = vsel %vm1443, %v1444, %v1442
        %v1446 = vrsqrt.pop %v302
        %v1447 = vmul.f32 %v302, %v1446
        %vm1448 = vcmp.eq.f32.partialorder %v302, inf
        %v1449 = vsel %vm1448, %v302, %v1447
        %vm1450 = vcmp.eq.f32.partialorder %v302, 0.0
        %v1451 = vand.u32 %v302, 2147483648
        %v1452 = vsel %vm1450, %v1451, %v1449
        %v1453 = vrsqrt.pop %v303
        %v1454 = vmul.f32 %v303, %v1453
        %vm1455 = vcmp.eq.f32.partialorder %v303, inf
        %v1456 = vsel %vm1455, %v303, %v1454
        %vm1457 = vcmp.eq.f32.partialorder %v303, 0.0
        %v1458 = vand.u32 %v303, 2147483648
        %v1459 = vsel %vm1457, %v1458, %v1456
        %v1460 = vrsqrt.pop %v304
        %v1461 = vmul.f32 %v304, %v1460
        %vm1462 = vcmp.eq.f32.partialorder %v304, inf
        %v1463 = vsel %vm1462, %v304, %v1461
        %vm1464 = vcmp.eq.f32.partialorder %v304, 0.0
        %v1465 = vand.u32 %v304, 2147483648
        %v1466 = vsel %vm1464, %v1465, %v1463
        %v1467 = vrsqrt.pop %v305
        %v1468 = vmul.f32 %v305, %v1467
        %vm1469 = vcmp.eq.f32.partialorder %v305, inf
        %v1470 = vsel %vm1469, %v305, %v1468
        %vm1471 = vcmp.eq.f32.partialorder %v305, 0.0
        %v1472 = vand.u32 %v305, 2147483648
        %v1473 = vsel %vm1471, %v1472, %v1470
        %v1474 = vrsqrt.pop %v306
        %v1475 = vmul.f32 %v306, %v1474
        %vm1476 = vcmp.eq.f32.partialorder %v306, inf
        %v1477 = vsel %vm1476, %v306, %v1475
        %vm1478 = vcmp.eq.f32.partialorder %v306, 0.0
        %v1479 = vand.u32 %v306, 2147483648
        %v1480 = vsel %vm1478, %v1479, %v1477
        %v1481 = vrsqrt.pop %v307
        %v1482 = vmul.f32 %v307, %v1481
        %vm1483 = vcmp.eq.f32.partialorder %v307, inf
        %v1484 = vsel %vm1483, %v307, %v1482
        %vm1485 = vcmp.eq.f32.partialorder %v307, 0.0
        %v1486 = vand.u32 %v307, 2147483648
        %v1487 = vsel %vm1485, %v1486, %v1484
        %v1488 = vrsqrt.pop %v308
        %v1489 = vmul.f32 %v308, %v1488
        %vm1490 = vcmp.eq.f32.partialorder %v308, inf
        %v1491 = vsel %vm1490, %v308, %v1489
        %vm1492 = vcmp.eq.f32.partialorder %v308, 0.0
        %v1493 = vand.u32 %v308, 2147483648
        %v1494 = vsel %vm1492, %v1493, %v1491
        %v1495 = vrsqrt.pop %v309
        %v1496 = vmul.f32 %v309, %v1495
        %vm1497 = vcmp.eq.f32.partialorder %v309, inf
        %v1498 = vsel %vm1497, %v309, %v1496
        %vm1499 = vcmp.eq.f32.partialorder %v309, 0.0
        %v1500 = vand.u32 %v309, 2147483648
        %v1501 = vsel %vm1499, %v1500, %v1498
        %v1502 = vrsqrt.pop %v310
        %v1503 = vmul.f32 %v310, %v1502
        %vm1504 = vcmp.eq.f32.partialorder %v310, inf
        %v1505 = vsel %vm1504, %v310, %v1503
        %vm1506 = vcmp.eq.f32.partialorder %v310, 0.0
        %v1507 = vand.u32 %v310, 2147483648
        %v1508 = vsel %vm1506, %v1507, %v1505
        %v1509 = vrsqrt.pop %v311
        %v1510 = vmul.f32 %v311, %v1509
        %vm1511 = vcmp.eq.f32.partialorder %v311, inf
        %v1512 = vsel %vm1511, %v311, %v1510
        %vm1513 = vcmp.eq.f32.partialorder %v311, 0.0
        %v1514 = vand.u32 %v311, 2147483648
        %v1515 = vsel %vm1513, %v1514, %v1512
        %v1516 = vrsqrt.pop %v312
        %v1517 = vmul.f32 %v312, %v1516
        %vm1518 = vcmp.eq.f32.partialorder %v312, inf
        %v1519 = vsel %vm1518, %v312, %v1517
        %vm1520 = vcmp.eq.f32.partialorder %v312, 0.0
        %v1521 = vand.u32 %v312, 2147483648
        %v1522 = vsel %vm1520, %v1521, %v1519
        %v1523 = vrsqrt.pop %v313
        %v1524 = vmul.f32 %v313, %v1523
        %vm1525 = vcmp.eq.f32.partialorder %v313, inf
        %v1526 = vsel %vm1525, %v313, %v1524
        %vm1527 = vcmp.eq.f32.partialorder %v313, 0.0
        %v1528 = vand.u32 %v313, 2147483648
        %v1529 = vsel %vm1527, %v1528, %v1526
        %v1530 = vrsqrt.pop %v314
        %v1531 = vmul.f32 %v314, %v1530
        %vm1532 = vcmp.eq.f32.partialorder %v314, inf
        %v1533 = vsel %vm1532, %v314, %v1531
        %vm1534 = vcmp.eq.f32.partialorder %v314, 0.0
        %v1535 = vand.u32 %v314, 2147483648
        %v1536 = vsel %vm1534, %v1535, %v1533
        %v1537 = vrsqrt.pop %v315
        %v1538 = vmul.f32 %v315, %v1537
        %vm1539 = vcmp.eq.f32.partialorder %v315, inf
        %v1540 = vsel %vm1539, %v315, %v1538
        %vm1541 = vcmp.eq.f32.partialorder %v315, 0.0
        %v1542 = vand.u32 %v315, 2147483648
        %v1543 = vsel %vm1541, %v1542, %v1540
        %v1544 = vrsqrt.pop %v316
        %v1545 = vmul.f32 %v316, %v1544
        %vm1546 = vcmp.eq.f32.partialorder %v316, inf
        %v1547 = vsel %vm1546, %v316, %v1545
        %vm1548 = vcmp.eq.f32.partialorder %v316, 0.0
        %v1549 = vand.u32 %v316, 2147483648
        %v1550 = vsel %vm1548, %v1549, %v1547
        %v1551 = vrsqrt.pop %v317
        %v1552 = vmul.f32 %v317, %v1551
        %vm1553 = vcmp.eq.f32.partialorder %v317, inf
        %v1554 = vsel %vm1553, %v317, %v1552
        %vm1555 = vcmp.eq.f32.partialorder %v317, 0.0
        %v1556 = vand.u32 %v317, 2147483648
        %v1557 = vsel %vm1555, %v1556, %v1554
        %v1558 = vrsqrt.pop %v318
        %v1559 = vmul.f32 %v318, %v1558
        %vm1560 = vcmp.eq.f32.partialorder %v318, inf
        %v1561 = vsel %vm1560, %v318, %v1559
        %vm1562 = vcmp.eq.f32.partialorder %v318, 0.0
        %v1563 = vand.u32 %v318, 2147483648
        %v1564 = vsel %vm1562, %v1563, %v1561
        %v1565 = vrsqrt.pop %v319
        %v1566 = vmul.f32 %v319, %v1565
        %vm1567 = vcmp.eq.f32.partialorder %v319, inf
        %v1568 = vsel %vm1567, %v319, %v1566
        %vm1569 = vcmp.eq.f32.partialorder %v319, 0.0
        %v1570 = vand.u32 %v319, 2147483648
        %v1571 = vsel %vm1569, %v1570, %v1568
        %v1572 = vrsqrt.pop %v320
        %v1573 = vmul.f32 %v320, %v1572
        %vm1574 = vcmp.eq.f32.partialorder %v320, inf
        %v1575 = vsel %vm1574, %v320, %v1573
        %vm1576 = vcmp.eq.f32.partialorder %v320, 0.0
        %v1577 = vand.u32 %v320, 2147483648
        %v1578 = vsel %vm1576, %v1577, %v1575
        %v1579 = vrsqrt.pop %v321
        %v1580 = vmul.f32 %v321, %v1579
        %vm1581 = vcmp.eq.f32.partialorder %v321, inf
        %v1582 = vsel %vm1581, %v321, %v1580
        %vm1583 = vcmp.eq.f32.partialorder %v321, 0.0
        %v1584 = vand.u32 %v321, 2147483648
        %v1585 = vsel %vm1583, %v1584, %v1582
        %v1586 = vrsqrt.pop %v322
        %v1587 = vmul.f32 %v322, %v1586
        %vm1588 = vcmp.eq.f32.partialorder %v322, inf
        %v1589 = vsel %vm1588, %v322, %v1587
        %vm1590 = vcmp.eq.f32.partialorder %v322, 0.0
        %v1591 = vand.u32 %v322, 2147483648
        %v1592 = vsel %vm1590, %v1591, %v1589
        %v1593 = vrsqrt.pop %v323
        %v1594 = vmul.f32 %v323, %v1593
        %vm1595 = vcmp.eq.f32.partialorder %v323, inf
        %v1596 = vsel %vm1595, %v323, %v1594
        %vm1597 = vcmp.eq.f32.partialorder %v323, 0.0
        %v1598 = vand.u32 %v323, 2147483648
        %v1599 = vsel %vm1597, %v1598, %v1596
        %v1600 = vrsqrt.pop %v324
        %v1601 = vmul.f32 %v324, %v1600
        %vm1602 = vcmp.eq.f32.partialorder %v324, inf
        %v1603 = vsel %vm1602, %v324, %v1601
        %vm1604 = vcmp.eq.f32.partialorder %v324, 0.0
        %v1605 = vand.u32 %v324, 2147483648
        %v1606 = vsel %vm1604, %v1605, %v1603
        %v1607 = vrsqrt.pop %v325
        %v1608 = vmul.f32 %v325, %v1607
        %vm1609 = vcmp.eq.f32.partialorder %v325, inf
        %v1610 = vsel %vm1609, %v325, %v1608
        %vm1611 = vcmp.eq.f32.partialorder %v325, 0.0
        %v1612 = vand.u32 %v325, 2147483648
        %v1613 = vsel %vm1611, %v1612, %v1610
        %v1614 = vrsqrt.pop %v326
        %v1615 = vmul.f32 %v326, %v1614
        %vm1616 = vcmp.eq.f32.partialorder %v326, inf
        %v1617 = vsel %vm1616, %v326, %v1615
        %vm1618 = vcmp.eq.f32.partialorder %v326, 0.0
        %v1619 = vand.u32 %v326, 2147483648
        %v1620 = vsel %vm1618, %v1619, %v1617
        %v1621 = vrsqrt.pop %v327
        %v1622 = vmul.f32 %v327, %v1621
        %vm1623 = vcmp.eq.f32.partialorder %v327, inf
        %v1624 = vsel %vm1623, %v327, %v1622
        %vm1625 = vcmp.eq.f32.partialorder %v327, 0.0
        %v1626 = vand.u32 %v327, 2147483648
        %v1627 = vsel %vm1625, %v1626, %v1624
        %v1628 = vrsqrt.pop %v328
        %v1629 = vmul.f32 %v328, %v1628
        %vm1630 = vcmp.eq.f32.partialorder %v328, inf
        %v1631 = vsel %vm1630, %v328, %v1629
        %vm1632 = vcmp.eq.f32.partialorder %v328, 0.0
        %v1633 = vand.u32 %v328, 2147483648
        %v1634 = vsel %vm1632, %v1633, %v1631
        %v1635 = vrsqrt.pop %v329
        %v1636 = vmul.f32 %v329, %v1635
        %vm1637 = vcmp.eq.f32.partialorder %v329, inf
        %v1638 = vsel %vm1637, %v329, %v1636
        %vm1639 = vcmp.eq.f32.partialorder %v329, 0.0
        %v1640 = vand.u32 %v329, 2147483648
        %v1641 = vsel %vm1639, %v1640, %v1638
        %v1642 = vrsqrt.pop %v330
        %v1643 = vmul.f32 %v330, %v1642
        %vm1644 = vcmp.eq.f32.partialorder %v330, inf
        %v1645 = vsel %vm1644, %v330, %v1643
        %vm1646 = vcmp.eq.f32.partialorder %v330, 0.0
        %v1647 = vand.u32 %v330, 2147483648
        %v1648 = vsel %vm1646, %v1647, %v1645
        %v1649 = vrsqrt.pop %v331
        %v1650 = vmul.f32 %v331, %v1649
        %vm1651 = vcmp.eq.f32.partialorder %v331, inf
        %v1652 = vsel %vm1651, %v331, %v1650
        %vm1653 = vcmp.eq.f32.partialorder %v331, 0.0
        %v1654 = vand.u32 %v331, 2147483648
        %v1655 = vsel %vm1653, %v1654, %v1652
        %v1656 = vrsqrt.pop %v332
        %v1657 = vmul.f32 %v332, %v1656
        %vm1658 = vcmp.eq.f32.partialorder %v332, inf
        %v1659 = vsel %vm1658, %v332, %v1657
        %vm1660 = vcmp.eq.f32.partialorder %v332, 0.0
        %v1661 = vand.u32 %v332, 2147483648
        %v1662 = vsel %vm1660, %v1661, %v1659
        %v1663 = vrsqrt.pop %v333
        %v1664 = vmul.f32 %v333, %v1663
        %vm1665 = vcmp.eq.f32.partialorder %v333, inf
        %v1666 = vsel %vm1665, %v333, %v1664
        %vm1667 = vcmp.eq.f32.partialorder %v333, 0.0
        %v1668 = vand.u32 %v333, 2147483648
        %v1669 = vsel %vm1667, %v1668, %v1666
        %v1670 = vrsqrt.pop %v334
        %v1671 = vmul.f32 %v334, %v1670
        %vm1672 = vcmp.eq.f32.partialorder %v334, inf
        %v1673 = vsel %vm1672, %v334, %v1671
        %vm1674 = vcmp.eq.f32.partialorder %v334, 0.0
        %v1675 = vand.u32 %v334, 2147483648
        %v1676 = vsel %vm1674, %v1675, %v1673
        %v1677 = vrsqrt.pop %v335
        %v1678 = vmul.f32 %v335, %v1677
        %vm1679 = vcmp.eq.f32.partialorder %v335, inf
        %v1680 = vsel %vm1679, %v335, %v1678
        %vm1681 = vcmp.eq.f32.partialorder %v335, 0.0
        %v1682 = vand.u32 %v335, 2147483648
        %v1683 = vsel %vm1681, %v1682, %v1680
        %v1684 = vrsqrt.pop %v336
        %v1685 = vmul.f32 %v336, %v1684
        %vm1686 = vcmp.eq.f32.partialorder %v336, inf
        %v1687 = vsel %vm1686, %v336, %v1685
        %vm1688 = vcmp.eq.f32.partialorder %v336, 0.0
        %v1689 = vand.u32 %v336, 2147483648
        %v1690 = vsel %vm1688, %v1689, %v1687
        %v1691 = vrsqrt.pop %v337
        %v1692 = vmul.f32 %v337, %v1691
        %vm1693 = vcmp.eq.f32.partialorder %v337, inf
        %v1694 = vsel %vm1693, %v337, %v1692
        %vm1695 = vcmp.eq.f32.partialorder %v337, 0.0
        %v1696 = vand.u32 %v337, 2147483648
        %v1697 = vsel %vm1695, %v1696, %v1694
        %v1698 = vrsqrt.pop %v338
        %v1699 = vmul.f32 %v338, %v1698
        %vm1700 = vcmp.eq.f32.partialorder %v338, inf
        %v1701 = vsel %vm1700, %v338, %v1699
        %vm1702 = vcmp.eq.f32.partialorder %v338, 0.0
        %v1703 = vand.u32 %v338, 2147483648
        %v1704 = vsel %vm1702, %v1703, %v1701
        %v1705 = vrsqrt.pop %v339
        %v1706 = vmul.f32 %v339, %v1705
        %vm1707 = vcmp.eq.f32.partialorder %v339, inf
        %v1708 = vsel %vm1707, %v339, %v1706
        %vm1709 = vcmp.eq.f32.partialorder %v339, 0.0
        %v1710 = vand.u32 %v339, 2147483648
        %v1711 = vsel %vm1709, %v1710, %v1708
        %v1712 = vrsqrt.pop %v340
        %v1713 = vmul.f32 %v340, %v1712
        %vm1714 = vcmp.eq.f32.partialorder %v340, inf
        %v1715 = vsel %vm1714, %v340, %v1713
        %vm1716 = vcmp.eq.f32.partialorder %v340, 0.0
        %v1717 = vand.u32 %v340, 2147483648
        %v1718 = vsel %vm1716, %v1717, %v1715
        %v1719 = vrsqrt.pop %v341
        %v1720 = vmul.f32 %v341, %v1719
        %vm1721 = vcmp.eq.f32.partialorder %v341, inf
        %v1722 = vsel %vm1721, %v341, %v1720
        %vm1723 = vcmp.eq.f32.partialorder %v341, 0.0
        %v1724 = vand.u32 %v341, 2147483648
        %v1725 = vsel %vm1723, %v1724, %v1722
        %v1726 = vrsqrt.pop %v342
        %v1727 = vmul.f32 %v342, %v1726
        %vm1728 = vcmp.eq.f32.partialorder %v342, inf
        %v1729 = vsel %vm1728, %v342, %v1727
        %vm1730 = vcmp.eq.f32.partialorder %v342, 0.0
        %v1731 = vand.u32 %v342, 2147483648
        %v1732 = vsel %vm1730, %v1731, %v1729
        %v1733 = vrsqrt.pop %v343
        %v1734 = vmul.f32 %v343, %v1733
        %vm1735 = vcmp.eq.f32.partialorder %v343, inf
        %v1736 = vsel %vm1735, %v343, %v1734
        %vm1737 = vcmp.eq.f32.partialorder %v343, 0.0
        %v1738 = vand.u32 %v343, 2147483648
        %v1739 = vsel %vm1737, %v1738, %v1736
        %v1740 = vrsqrt.pop %v344
        %v1741 = vmul.f32 %v344, %v1740
        %vm1742 = vcmp.eq.f32.partialorder %v344, inf
        %v1743 = vsel %vm1742, %v344, %v1741
        %vm1744 = vcmp.eq.f32.partialorder %v344, 0.0
        %v1745 = vand.u32 %v344, 2147483648
        %v1746 = vsel %vm1744, %v1745, %v1743
        %v1747 = vrsqrt.pop %v345
        %v1748 = vmul.f32 %v345, %v1747
        %vm1749 = vcmp.eq.f32.partialorder %v345, inf
        %v1750 = vsel %vm1749, %v345, %v1748
        %vm1751 = vcmp.eq.f32.partialorder %v345, 0.0
        %v1752 = vand.u32 %v345, 2147483648
        %v1753 = vsel %vm1751, %v1752, %v1750
        %v1754 = vrsqrt.pop %v346
        %v1755 = vmul.f32 %v346, %v1754
        %vm1756 = vcmp.eq.f32.partialorder %v346, inf
        %v1757 = vsel %vm1756, %v346, %v1755
        %vm1758 = vcmp.eq.f32.partialorder %v346, 0.0
        %v1759 = vand.u32 %v346, 2147483648
        %v1760 = vsel %vm1758, %v1759, %v1757
        %v1761 = vrsqrt.pop %v347
        %v1762 = vmul.f32 %v347, %v1761
        %vm1763 = vcmp.eq.f32.partialorder %v347, inf
        %v1764 = vsel %vm1763, %v347, %v1762
        %vm1765 = vcmp.eq.f32.partialorder %v347, 0.0
        %v1766 = vand.u32 %v347, 2147483648
        %v1767 = vsel %vm1765, %v1766, %v1764
        %v1768 = vrsqrt.pop %v348
        %v1769 = vmul.f32 %v348, %v1768
        %vm1770 = vcmp.eq.f32.partialorder %v348, inf
        %v1771 = vsel %vm1770, %v348, %v1769
        %vm1772 = vcmp.eq.f32.partialorder %v348, 0.0
        %v1773 = vand.u32 %v348, 2147483648
        %v1774 = vsel %vm1772, %v1773, %v1771
        %v1775 = vrsqrt.pop %v349
        %v1776 = vmul.f32 %v349, %v1775
        %vm1777 = vcmp.eq.f32.partialorder %v349, inf
        %v1778 = vsel %vm1777, %v349, %v1776
        %vm1779 = vcmp.eq.f32.partialorder %v349, 0.0
        %v1780 = vand.u32 %v349, 2147483648
        %v1781 = vsel %vm1779, %v1780, %v1778
        %v1782 = vrsqrt.pop %v350
        %v1783 = vmul.f32 %v350, %v1782
        %vm1784 = vcmp.eq.f32.partialorder %v350, inf
        %v1785 = vsel %vm1784, %v350, %v1783
        %vm1786 = vcmp.eq.f32.partialorder %v350, 0.0
        %v1787 = vand.u32 %v350, 2147483648
        %v1788 = vsel %vm1786, %v1787, %v1785
        %v1789 = vrsqrt.pop %v351
        %v1790 = vmul.f32 %v351, %v1789
        %vm1791 = vcmp.eq.f32.partialorder %v351, inf
        %v1792 = vsel %vm1791, %v351, %v1790
        %vm1793 = vcmp.eq.f32.partialorder %v351, 0.0
        %v1794 = vand.u32 %v351, 2147483648
        %v1795 = vsel %vm1793, %v1794, %v1792
        %v1796 = vrsqrt.pop %v352
        %v1797 = vmul.f32 %v352, %v1796
        %vm1798 = vcmp.eq.f32.partialorder %v352, inf
        %v1799 = vsel %vm1798, %v352, %v1797
        %vm1800 = vcmp.eq.f32.partialorder %v352, 0.0
        %v1801 = vand.u32 %v352, 2147483648
        %v1802 = vsel %vm1800, %v1801, %v1799
        %v1803 = vrsqrt.pop %v353
        %v1804 = vmul.f32 %v353, %v1803
        %vm1805 = vcmp.eq.f32.partialorder %v353, inf
        %v1806 = vsel %vm1805, %v353, %v1804
        %vm1807 = vcmp.eq.f32.partialorder %v353, 0.0
        %v1808 = vand.u32 %v353, 2147483648
        %v1809 = vsel %vm1807, %v1808, %v1806
        %v1810 = vrsqrt.pop %v354
        %v1811 = vmul.f32 %v354, %v1810
        %vm1812 = vcmp.eq.f32.partialorder %v354, inf
        %v1813 = vsel %vm1812, %v354, %v1811
        %vm1814 = vcmp.eq.f32.partialorder %v354, 0.0
        %v1815 = vand.u32 %v354, 2147483648
        %v1816 = vsel %vm1814, %v1815, %v1813
        %v1817 = vrsqrt.pop %v355
        %v1818 = vmul.f32 %v355, %v1817
        %vm1819 = vcmp.eq.f32.partialorder %v355, inf
        %v1820 = vsel %vm1819, %v355, %v1818
        %vm1821 = vcmp.eq.f32.partialorder %v355, 0.0
        %v1822 = vand.u32 %v355, 2147483648
        %v1823 = vsel %vm1821, %v1822, %v1820
        %v1824 = vrsqrt.pop %v356
        %v1825 = vmul.f32 %v356, %v1824
        %vm1826 = vcmp.eq.f32.partialorder %v356, inf
        %v1827 = vsel %vm1826, %v356, %v1825
        %vm1828 = vcmp.eq.f32.partialorder %v356, 0.0
        %v1829 = vand.u32 %v356, 2147483648
        %v1830 = vsel %vm1828, %v1829, %v1827
        %v1831 = vrsqrt.pop %v357
        %v1832 = vmul.f32 %v357, %v1831
        %vm1833 = vcmp.eq.f32.partialorder %v357, inf
        %v1834 = vsel %vm1833, %v357, %v1832
        %vm1835 = vcmp.eq.f32.partialorder %v357, 0.0
        %v1836 = vand.u32 %v357, 2147483648
        %v1837 = vsel %vm1835, %v1836, %v1834
        %v1838 = vrsqrt.pop %v358
        %v1839 = vmul.f32 %v358, %v1838
        %vm1840 = vcmp.eq.f32.partialorder %v358, inf
        %v1841 = vsel %vm1840, %v358, %v1839
        %vm1842 = vcmp.eq.f32.partialorder %v358, 0.0
        %v1843 = vand.u32 %v358, 2147483648
        %v1844 = vsel %vm1842, %v1843, %v1841
        %v1845 = vrsqrt.pop %v359
        %v1846 = vmul.f32 %v359, %v1845
        %vm1847 = vcmp.eq.f32.partialorder %v359, inf
        %v1848 = vsel %vm1847, %v359, %v1846
        %vm1849 = vcmp.eq.f32.partialorder %v359, 0.0
        %v1850 = vand.u32 %v359, 2147483648
        %v1851 = vsel %vm1849, %v1850, %v1848
        %v1852 = vrsqrt.pop %v360
        %v1853 = vmul.f32 %v360, %v1852
        %vm1854 = vcmp.eq.f32.partialorder %v360, inf
        %v1855 = vsel %vm1854, %v360, %v1853
        %vm1856 = vcmp.eq.f32.partialorder %v360, 0.0
        %v1857 = vand.u32 %v360, 2147483648
        %v1858 = vsel %vm1856, %v1857, %v1855
        %v1859 = vrsqrt.pop %v361
        %v1860 = vmul.f32 %v361, %v1859
        %vm1861 = vcmp.eq.f32.partialorder %v361, inf
        %v1862 = vsel %vm1861, %v361, %v1860
        %vm1863 = vcmp.eq.f32.partialorder %v361, 0.0
        %v1864 = vand.u32 %v361, 2147483648
        %v1865 = vsel %vm1863, %v1864, %v1862
        %v1866 = vrsqrt.pop %v362
        %v1867 = vmul.f32 %v362, %v1866
        %vm1868 = vcmp.eq.f32.partialorder %v362, inf
        %v1869 = vsel %vm1868, %v362, %v1867
        %vm1870 = vcmp.eq.f32.partialorder %v362, 0.0
        %v1871 = vand.u32 %v362, 2147483648
        %v1872 = vsel %vm1870, %v1871, %v1869
        %v1873 = vrsqrt.pop %v363
        %v1874 = vmul.f32 %v363, %v1873
        %vm1875 = vcmp.eq.f32.partialorder %v363, inf
        %v1876 = vsel %vm1875, %v363, %v1874
        %vm1877 = vcmp.eq.f32.partialorder %v363, 0.0
        %v1878 = vand.u32 %v363, 2147483648
        %v1879 = vsel %vm1877, %v1878, %v1876
        %v1880 = vrsqrt.pop %v364
        %v1881 = vmul.f32 %v364, %v1880
        %vm1882 = vcmp.eq.f32.partialorder %v364, inf
        %v1883 = vsel %vm1882, %v364, %v1881
        %vm1884 = vcmp.eq.f32.partialorder %v364, 0.0
        %v1885 = vand.u32 %v364, 2147483648
        %v1886 = vsel %vm1884, %v1885, %v1883
        %v1887 = vrsqrt.pop %v365
        %v1888 = vmul.f32 %v365, %v1887
        %vm1889 = vcmp.eq.f32.partialorder %v365, inf
        %v1890 = vsel %vm1889, %v365, %v1888
        %vm1891 = vcmp.eq.f32.partialorder %v365, 0.0
        %v1892 = vand.u32 %v365, 2147483648
        %v1893 = vsel %vm1891, %v1892, %v1890
        %v1894 = vrsqrt.pop %v366
        %v1895 = vmul.f32 %v366, %v1894
        %vm1896 = vcmp.eq.f32.partialorder %v366, inf
        %v1897 = vsel %vm1896, %v366, %v1895
        %vm1898 = vcmp.eq.f32.partialorder %v366, 0.0
        %v1899 = vand.u32 %v366, 2147483648
        %v1900 = vsel %vm1898, %v1899, %v1897
        %v1901 = vrsqrt.pop %v367
        %v1902 = vmul.f32 %v367, %v1901
        %vm1903 = vcmp.eq.f32.partialorder %v367, inf
        %v1904 = vsel %vm1903, %v367, %v1902
        %vm1905 = vcmp.eq.f32.partialorder %v367, 0.0
        %v1906 = vand.u32 %v367, 2147483648
        %v1907 = vsel %vm1905, %v1906, %v1904
        %v1908 = vrsqrt.pop %v368
        %v1909 = vmul.f32 %v368, %v1908
        %vm1910 = vcmp.eq.f32.partialorder %v368, inf
        %v1911 = vsel %vm1910, %v368, %v1909
        %vm1912 = vcmp.eq.f32.partialorder %v368, 0.0
        %v1913 = vand.u32 %v368, 2147483648
        %v1914 = vsel %vm1912, %v1913, %v1911
        %v1915 = vrsqrt.pop %v369
        %v1916 = vmul.f32 %v369, %v1915
        %vm1917 = vcmp.eq.f32.partialorder %v369, inf
        %v1918 = vsel %vm1917, %v369, %v1916
        %vm1919 = vcmp.eq.f32.partialorder %v369, 0.0
        %v1920 = vand.u32 %v369, 2147483648
        %v1921 = vsel %vm1919, %v1920, %v1918
        %v1922 = vrsqrt.pop %v370
        %v1923 = vmul.f32 %v370, %v1922
        %vm1924 = vcmp.eq.f32.partialorder %v370, inf
        %v1925 = vsel %vm1924, %v370, %v1923
        %vm1926 = vcmp.eq.f32.partialorder %v370, 0.0
        %v1927 = vand.u32 %v370, 2147483648
        %v1928 = vsel %vm1926, %v1927, %v1925
        %v1929 = vrsqrt.pop %v371
        %v1930 = vmul.f32 %v371, %v1929
        %vm1931 = vcmp.eq.f32.partialorder %v371, inf
        %v1932 = vsel %vm1931, %v371, %v1930
        %vm1933 = vcmp.eq.f32.partialorder %v371, 0.0
        %v1934 = vand.u32 %v371, 2147483648
        %v1935 = vsel %vm1933, %v1934, %v1932
        %v1936 = vrsqrt.pop %v372
        %v1937 = vmul.f32 %v372, %v1936
        %vm1938 = vcmp.eq.f32.partialorder %v372, inf
        %v1939 = vsel %vm1938, %v372, %v1937
        %vm1940 = vcmp.eq.f32.partialorder %v372, 0.0
        %v1941 = vand.u32 %v372, 2147483648
        %v1942 = vsel %vm1940, %v1941, %v1939
        %v1943 = vrsqrt.pop %v373
        %v1944 = vmul.f32 %v373, %v1943
        %vm1945 = vcmp.eq.f32.partialorder %v373, inf
        %v1946 = vsel %vm1945, %v373, %v1944
        %vm1947 = vcmp.eq.f32.partialorder %v373, 0.0
        %v1948 = vand.u32 %v373, 2147483648
        %v1949 = vsel %vm1947, %v1948, %v1946
        %v1950 = vrsqrt.pop %v374
        %v1951 = vmul.f32 %v374, %v1950
        %vm1952 = vcmp.eq.f32.partialorder %v374, inf
        %v1953 = vsel %vm1952, %v374, %v1951
        %vm1954 = vcmp.eq.f32.partialorder %v374, 0.0
        %v1955 = vand.u32 %v374, 2147483648
        %v1956 = vsel %vm1954, %v1955, %v1953
        %v1957 = vrsqrt.pop %v375
        %v1958 = vmul.f32 %v375, %v1957
        %vm1959 = vcmp.eq.f32.partialorder %v375, inf
        %v1960 = vsel %vm1959, %v375, %v1958
        %vm1961 = vcmp.eq.f32.partialorder %v375, 0.0
        %v1962 = vand.u32 %v375, 2147483648
        %v1963 = vsel %vm1961, %v1962, %v1960
        %v1964 = vrsqrt.pop %v376
        %v1965 = vmul.f32 %v376, %v1964
        %vm1966 = vcmp.eq.f32.partialorder %v376, inf
        %v1967 = vsel %vm1966, %v376, %v1965
        %vm1968 = vcmp.eq.f32.partialorder %v376, 0.0
        %v1969 = vand.u32 %v376, 2147483648
        %v1970 = vsel %vm1968, %v1969, %v1967
        %v1971 = vrsqrt.pop %v377
        %v1972 = vmul.f32 %v377, %v1971
        %vm1973 = vcmp.eq.f32.partialorder %v377, inf
        %v1974 = vsel %vm1973, %v377, %v1972
        %vm1975 = vcmp.eq.f32.partialorder %v377, 0.0
        %v1976 = vand.u32 %v377, 2147483648
        %v1977 = vsel %vm1975, %v1976, %v1974
        %v1978 = vrsqrt.pop %v378
        %v1979 = vmul.f32 %v378, %v1978
        %vm1980 = vcmp.eq.f32.partialorder %v378, inf
        %v1981 = vsel %vm1980, %v378, %v1979
        %vm1982 = vcmp.eq.f32.partialorder %v378, 0.0
        %v1983 = vand.u32 %v378, 2147483648
        %v1984 = vsel %vm1982, %v1983, %v1981
        %v1985 = vrsqrt.pop %v379
        %v1986 = vmul.f32 %v379, %v1985
        %vm1987 = vcmp.eq.f32.partialorder %v379, inf
        %v1988 = vsel %vm1987, %v379, %v1986
        %vm1989 = vcmp.eq.f32.partialorder %v379, 0.0
        %v1990 = vand.u32 %v379, 2147483648
        %v1991 = vsel %vm1989, %v1990, %v1988
        %v1992 = vrsqrt.pop %v380
        %v1993 = vmul.f32 %v380, %v1992
        %vm1994 = vcmp.eq.f32.partialorder %v380, inf
        %v1995 = vsel %vm1994, %v380, %v1993
        %vm1996 = vcmp.eq.f32.partialorder %v380, 0.0
        %v1997 = vand.u32 %v380, 2147483648
        %v1998 = vsel %vm1996, %v1997, %v1995
        %v1999 = vrsqrt.pop %v381
        %v2000 = vmul.f32 %v381, %v1999
        %vm2001 = vcmp.eq.f32.partialorder %v381, inf
        %v2002 = vsel %vm2001, %v381, %v2000
        %vm2003 = vcmp.eq.f32.partialorder %v381, 0.0
        %v2004 = vand.u32 %v381, 2147483648
        %v2005 = vsel %vm2003, %v2004, %v2002
        %v2006 = vrsqrt.pop %v382
        %v2007 = vmul.f32 %v382, %v2006
        %vm2008 = vcmp.eq.f32.partialorder %v382, inf
        %v2009 = vsel %vm2008, %v382, %v2007
        %vm2010 = vcmp.eq.f32.partialorder %v382, 0.0
        %v2011 = vand.u32 %v382, 2147483648
        %v2012 = vsel %vm2010, %v2011, %v2009
        %v2013 = vrsqrt.pop %v383
        %v2014 = vmul.f32 %v383, %v2013
        %vm2015 = vcmp.eq.f32.partialorder %v383, inf
        %v2016 = vsel %vm2015, %v383, %v2014
        %vm2017 = vcmp.eq.f32.partialorder %v383, 0.0
        %v2018 = vand.u32 %v383, 2147483648
        %v2019 = vsel %vm2017, %v2018, %v2016
        %v2020 = vrsqrt.pop %v384
        %v2021 = vmul.f32 %v384, %v2020
        %vm2022 = vcmp.eq.f32.partialorder %v384, inf
        %v2023 = vsel %vm2022, %v384, %v2021
        %vm2024 = vcmp.eq.f32.partialorder %v384, 0.0
        %v2025 = vand.u32 %v384, 2147483648
        %v2026 = vsel %vm2024, %v2025, %v2023
        %v2027 = vrsqrt.pop %v385
        %v2028 = vmul.f32 %v385, %v2027
        %vm2029 = vcmp.eq.f32.partialorder %v385, inf
        %v2030 = vsel %vm2029, %v385, %v2028
        %vm2031 = vcmp.eq.f32.partialorder %v385, 0.0
        %v2032 = vand.u32 %v385, 2147483648
        %v2033 = vsel %vm2031, %v2032, %v2030
        %v2034 = vrsqrt.pop %v386
        %v2035 = vmul.f32 %v386, %v2034
        %vm2036 = vcmp.eq.f32.partialorder %v386, inf
        %v2037 = vsel %vm2036, %v386, %v2035
        %vm2038 = vcmp.eq.f32.partialorder %v386, 0.0
        %v2039 = vand.u32 %v386, 2147483648
        %v2040 = vsel %vm2038, %v2039, %v2037
        %v2041 = vrsqrt.pop %v387
        %v2042 = vmul.f32 %v387, %v2041
        %vm2043 = vcmp.eq.f32.partialorder %v387, inf
        %v2044 = vsel %vm2043, %v387, %v2042
        %vm2045 = vcmp.eq.f32.partialorder %v387, 0.0
        %v2046 = vand.u32 %v387, 2147483648
        %v2047 = vsel %vm2045, %v2046, %v2044
        %v2048 = vrsqrt.pop %v388
        %v2049 = vmul.f32 %v388, %v2048
        %vm2050 = vcmp.eq.f32.partialorder %v388, inf
        %v2051 = vsel %vm2050, %v388, %v2049
        %vm2052 = vcmp.eq.f32.partialorder %v388, 0.0
        %v2053 = vand.u32 %v388, 2147483648
        %v2054 = vsel %vm2052, %v2053, %v2051
        %v2055 = vrsqrt.pop %v389
        %v2056 = vmul.f32 %v389, %v2055
        %vm2057 = vcmp.eq.f32.partialorder %v389, inf
        %v2058 = vsel %vm2057, %v389, %v2056
        %vm2059 = vcmp.eq.f32.partialorder %v389, 0.0
        %v2060 = vand.u32 %v389, 2147483648
        %v2061 = vsel %vm2059, %v2060, %v2058
        %v2062 = vrsqrt.pop %v390
        %v2063 = vmul.f32 %v390, %v2062
        %vm2064 = vcmp.eq.f32.partialorder %v390, inf
        %v2065 = vsel %vm2064, %v390, %v2063
        %vm2066 = vcmp.eq.f32.partialorder %v390, 0.0
        %v2067 = vand.u32 %v390, 2147483648
        %v2068 = vsel %vm2066, %v2067, %v2065
        %v2069 = vrsqrt.pop %v391
        %v2070 = vmul.f32 %v391, %v2069
        %vm2071 = vcmp.eq.f32.partialorder %v391, inf
        %v2072 = vsel %vm2071, %v391, %v2070
        %vm2073 = vcmp.eq.f32.partialorder %v391, 0.0
        %v2074 = vand.u32 %v391, 2147483648
        %v2075 = vsel %vm2073, %v2074, %v2072
        %v2076 = vrsqrt.pop %v392
        %v2077 = vmul.f32 %v392, %v2076
        %vm2078 = vcmp.eq.f32.partialorder %v392, inf
        %v2079 = vsel %vm2078, %v392, %v2077
        %vm2080 = vcmp.eq.f32.partialorder %v392, 0.0
        %v2081 = vand.u32 %v392, 2147483648
        %v2082 = vsel %vm2080, %v2081, %v2079
        %v2083 = vrsqrt.pop %v393
        %v2084 = vmul.f32 %v393, %v2083
        %vm2085 = vcmp.eq.f32.partialorder %v393, inf
        %v2086 = vsel %vm2085, %v393, %v2084
        %vm2087 = vcmp.eq.f32.partialorder %v393, 0.0
        %v2088 = vand.u32 %v393, 2147483648
        %v2089 = vsel %vm2087, %v2088, %v2086
        %v2090 = vrsqrt.pop %v394
        %v2091 = vmul.f32 %v394, %v2090
        %vm2092 = vcmp.eq.f32.partialorder %v394, inf
        %v2093 = vsel %vm2092, %v394, %v2091
        %vm2094 = vcmp.eq.f32.partialorder %v394, 0.0
        %v2095 = vand.u32 %v394, 2147483648
        %v2096 = vsel %vm2094, %v2095, %v2093
        %v2097 = vrsqrt.pop %v395
        %v2098 = vmul.f32 %v395, %v2097
        %vm2099 = vcmp.eq.f32.partialorder %v395, inf
        %v2100 = vsel %vm2099, %v395, %v2098
        %vm2101 = vcmp.eq.f32.partialorder %v395, 0.0
        %v2102 = vand.u32 %v395, 2147483648
        %v2103 = vsel %vm2101, %v2102, %v2100
        %v2104 = vrsqrt.pop %v396
        %v2105 = vmul.f32 %v396, %v2104
        %vm2106 = vcmp.eq.f32.partialorder %v396, inf
        %v2107 = vsel %vm2106, %v396, %v2105
        %vm2108 = vcmp.eq.f32.partialorder %v396, 0.0
        %v2109 = vand.u32 %v396, 2147483648
        %v2110 = vsel %vm2108, %v2109, %v2107
        %v2111 = vrsqrt.pop %v397
        %v2112 = vmul.f32 %v397, %v2111
        %vm2113 = vcmp.eq.f32.partialorder %v397, inf
        %v2114 = vsel %vm2113, %v397, %v2112
        %vm2115 = vcmp.eq.f32.partialorder %v397, 0.0
        %v2116 = vand.u32 %v397, 2147483648
        %v2117 = vsel %vm2115, %v2116, %v2114
        %v2118 = vrsqrt.pop %v398
        %v2119 = vmul.f32 %v398, %v2118
        %vm2120 = vcmp.eq.f32.partialorder %v398, inf
        %v2121 = vsel %vm2120, %v398, %v2119
        %vm2122 = vcmp.eq.f32.partialorder %v398, 0.0
        %v2123 = vand.u32 %v398, 2147483648
        %v2124 = vsel %vm2122, %v2123, %v2121
        %v2125 = vrsqrt.pop %v399
        %v2126 = vmul.f32 %v399, %v2125
        %vm2127 = vcmp.eq.f32.partialorder %v399, inf
        %v2128 = vsel %vm2127, %v399, %v2126
        %vm2129 = vcmp.eq.f32.partialorder %v399, 0.0
        %v2130 = vand.u32 %v399, 2147483648
        %v2131 = vsel %vm2129, %v2130, %v2128
        %v2132 = vrsqrt.pop %v400
        %v2133 = vmul.f32 %v400, %v2132
        %vm2134 = vcmp.eq.f32.partialorder %v400, inf
        %v2135 = vsel %vm2134, %v400, %v2133
        %vm2136 = vcmp.eq.f32.partialorder %v400, 0.0
        %v2137 = vand.u32 %v400, 2147483648
        %v2138 = vsel %vm2136, %v2137, %v2135
        %v2139 = vrsqrt.pop %v401
        %v2140 = vmul.f32 %v401, %v2139
        %vm2141 = vcmp.eq.f32.partialorder %v401, inf
        %v2142 = vsel %vm2141, %v401, %v2140
        %vm2143 = vcmp.eq.f32.partialorder %v401, 0.0
        %v2144 = vand.u32 %v401, 2147483648
        %v2145 = vsel %vm2143, %v2144, %v2142
        %v2146 = vrsqrt.pop %v402
        %v2147 = vmul.f32 %v402, %v2146
        %vm2148 = vcmp.eq.f32.partialorder %v402, inf
        %v2149 = vsel %vm2148, %v402, %v2147
        %vm2150 = vcmp.eq.f32.partialorder %v402, 0.0
        %v2151 = vand.u32 %v402, 2147483648
        %v2152 = vsel %vm2150, %v2151, %v2149
        %v2153 = vrsqrt.pop %v403
        %v2154 = vmul.f32 %v403, %v2153
        %vm2155 = vcmp.eq.f32.partialorder %v403, inf
        %v2156 = vsel %vm2155, %v403, %v2154
        %vm2157 = vcmp.eq.f32.partialorder %v403, 0.0
        %v2158 = vand.u32 %v403, 2147483648
        %v2159 = vsel %vm2157, %v2158, %v2156
        %v2160 = vrsqrt.pop %v404
        %v2161 = vmul.f32 %v404, %v2160
        %vm2162 = vcmp.eq.f32.partialorder %v404, inf
        %v2163 = vsel %vm2162, %v404, %v2161
        %vm2164 = vcmp.eq.f32.partialorder %v404, 0.0
        %v2165 = vand.u32 %v404, 2147483648
        %v2166 = vsel %vm2164, %v2165, %v2163
        %v2167 = vrsqrt.pop %v405
        %v2168 = vmul.f32 %v405, %v2167
        %vm2169 = vcmp.eq.f32.partialorder %v405, inf
        %v2170 = vsel %vm2169, %v405, %v2168
        %vm2171 = vcmp.eq.f32.partialorder %v405, 0.0
        %v2172 = vand.u32 %v405, 2147483648
        %v2173 = vsel %vm2171, %v2172, %v2170
        %v2174 = vrsqrt.pop %v406
        %v2175 = vmul.f32 %v406, %v2174
        %vm2176 = vcmp.eq.f32.partialorder %v406, inf
        %v2177 = vsel %vm2176, %v406, %v2175
        %vm2178 = vcmp.eq.f32.partialorder %v406, 0.0
        %v2179 = vand.u32 %v406, 2147483648
        %v2180 = vsel %vm2178, %v2179, %v2177
        %v2181 = vrsqrt.pop %v407
        %v2182 = vmul.f32 %v407, %v2181
        %vm2183 = vcmp.eq.f32.partialorder %v407, inf
        %v2184 = vsel %vm2183, %v407, %v2182
        %vm2185 = vcmp.eq.f32.partialorder %v407, 0.0
        %v2186 = vand.u32 %v407, 2147483648
        %v2187 = vsel %vm2185, %v2186, %v2184
        %v2188 = vrsqrt.pop %v408
        %v2189 = vmul.f32 %v408, %v2188
        %vm2190 = vcmp.eq.f32.partialorder %v408, inf
        %v2191 = vsel %vm2190, %v408, %v2189
        %vm2192 = vcmp.eq.f32.partialorder %v408, 0.0
        %v2193 = vand.u32 %v408, 2147483648
        %v2194 = vsel %vm2192, %v2193, %v2191
        %v2195 = vrsqrt.pop %v409
        %v2196 = vmul.f32 %v409, %v2195
        %vm2197 = vcmp.eq.f32.partialorder %v409, inf
        %v2198 = vsel %vm2197, %v409, %v2196
        %vm2199 = vcmp.eq.f32.partialorder %v409, 0.0
        %v2200 = vand.u32 %v409, 2147483648
        %v2201 = vsel %vm2199, %v2200, %v2198
        %2202 = vst [vmem:[%s151] sm:$0xff] %v416
        %2203 = vst [vmem:[%s151 + $0x8] sm:$0xff] %v423
        %2204 = vst [vmem:[%s151 + $0x10] sm:$0xff] %v430
        %2205 = vst [vmem:[%s151 + $0x18] sm:$0xff] %v437
        %2206 = vst [vmem:[%s151 + $0x20] sm:$0xff] %v444
        %2207 = vst [vmem:[%s151 + $0x28] sm:$0xff] %v451
        %2208 = vst [vmem:[%s151 + $0x30] sm:$0xff] %v458
        %2209 = vst [vmem:[%s151 + $0x38] sm:$0xff] %v465
        %2210 = vst [vmem:[%s151 + $0x40] sm:$0xff] %v472
        %2211 = vst [vmem:[%s151 + $0x48] sm:$0xff] %v479
        %2212 = vst [vmem:[%s151 + $0x50] sm:$0xff] %v486
        %2213 = vst [vmem:[%s151 + $0x58] sm:$0xff] %v493
        %2214 = vst [vmem:[%s151 + $0x60] sm:$0xff] %v500
        %2215 = vst [vmem:[%s151 + $0x68] sm:$0xff] %v507
        %2216 = vst [vmem:[%s151 + $0x70] sm:$0xff] %v514
        %2217 = vst [vmem:[%s151 + $0x78] sm:$0xff] %v521
        %2218 = vst [vmem:[%s151 + $0x80] sm:$0xff] %v528
        %2219 = vst [vmem:[%s151 + $0x88] sm:$0xff] %v535
        %2220 = vst [vmem:[%s151 + $0x90] sm:$0xff] %v542
        %2221 = vst [vmem:[%s151 + $0x98] sm:$0xff] %v549
        %2222 = vst [vmem:[%s151 + $0xa0] sm:$0xff] %v556
        %2223 = vst [vmem:[%s151 + $0xa8] sm:$0xff] %v563
        %2224 = vst [vmem:[%s151 + $0xb0] sm:$0xff] %v570
        %2225 = vst [vmem:[%s151 + $0xb8] sm:$0xff] %v577
        %2226 = vst [vmem:[%s151 + $0xc0] sm:$0xff] %v584
        %2227 = vst [vmem:[%s151 + $0xc8] sm:$0xff] %v591
        %2228 = vst [vmem:[%s151 + $0xd0] sm:$0xff] %v598
        %2229 = vst [vmem:[%s151 + $0xd8] sm:$0xff] %v605
        %2230 = vst [vmem:[%s151 + $0xe0] sm:$0xff] %v612
        %2231 = vst [vmem:[%s151 + $0xe8] sm:$0xff] %v619
        %2232 = vst [vmem:[%s151 + $0xf0] sm:$0xff] %v626
        %2233 = vst [vmem:[%s151 + $0xf8] sm:$0xff] %v633
        %2234 = vst [vmem:[%s151 + $0x100] sm:$0xff] %v640
        %2235 = vst [vmem:[%s151 + $0x108] sm:$0xff] %v647
        %2236 = vst [vmem:[%s151 + $0x110] sm:$0xff] %v654
        %2237 = vst [vmem:[%s151 + $0x118] sm:$0xff] %v661
        %2238 = vst [vmem:[%s151 + $0x120] sm:$0xff] %v668
        %2239 = vst [vmem:[%s151 + $0x128] sm:$0xff] %v675
        %2240 = vst [vmem:[%s151 + $0x130] sm:$0xff] %v682
        %2241 = vst [vmem:[%s151 + $0x138] sm:$0xff] %v689
        %2242 = vst [vmem:[%s151 + $0x140] sm:$0xff] %v696
        %2243 = vst [vmem:[%s151 + $0x148] sm:$0xff] %v703
        %2244 = vst [vmem:[%s151 + $0x150] sm:$0xff] %v710
        %2245 = vst [vmem:[%s151 + $0x158] sm:$0xff] %v717
        %2246 = vst [vmem:[%s151 + $0x160] sm:$0xff] %v724
        %2247 = vst [vmem:[%s151 + $0x168] sm:$0xff] %v731
        %2248 = vst [vmem:[%s151 + $0x170] sm:$0xff] %v738
        %2249 = vst [vmem:[%s151 + $0x178] sm:$0xff] %v745
        %2250 = vst [vmem:[%s151 + $0x180] sm:$0xff] %v752
        %2251 = vst [vmem:[%s151 + $0x188] sm:$0xff] %v759
        %2252 = vst [vmem:[%s151 + $0x190] sm:$0xff] %v766
        %2253 = vst [vmem:[%s151 + $0x198] sm:$0xff] %v773
        %2254 = vst [vmem:[%s151 + $0x1a0] sm:$0xff] %v780
        %2255 = vst [vmem:[%s151 + $0x1a8] sm:$0xff] %v787
        %2256 = vst [vmem:[%s151 + $0x1b0] sm:$0xff] %v794
        %2257 = vst [vmem:[%s151 + $0x1b8] sm:$0xff] %v801
        %2258 = vst [vmem:[%s151 + $0x1c0] sm:$0xff] %v808
        %2259 = vst [vmem:[%s151 + $0x1c8] sm:$0xff] %v815
        %2260 = vst [vmem:[%s151 + $0x1d0] sm:$0xff] %v822
        %2261 = vst [vmem:[%s151 + $0x1d8] sm:$0xff] %v829
        %2262 = vst [vmem:[%s151 + $0x1e0] sm:$0xff] %v836
        %2263 = vst [vmem:[%s151 + $0x1e8] sm:$0xff] %v843
        %2264 = vst [vmem:[%s151 + $0x1f0] sm:$0xff] %v850
        %2265 = vst [vmem:[%s151 + $0x1f8] sm:$0xff] %v857
        %2266 = vst [vmem:[%s151 + $0x200] sm:$0xff] %v864
        %2267 = vst [vmem:[%s151 + $0x208] sm:$0xff] %v871
        %2268 = vst [vmem:[%s151 + $0x210] sm:$0xff] %v878
        %2269 = vst [vmem:[%s151 + $0x218] sm:$0xff] %v885
        %2270 = vst [vmem:[%s151 + $0x220] sm:$0xff] %v892
        %2271 = vst [vmem:[%s151 + $0x228] sm:$0xff] %v899
        %2272 = vst [vmem:[%s151 + $0x230] sm:$0xff] %v906
        %2273 = vst [vmem:[%s151 + $0x238] sm:$0xff] %v913
        %2274 = vst [vmem:[%s151 + $0x240] sm:$0xff] %v920
        %2275 = vst [vmem:[%s151 + $0x248] sm:$0xff] %v927
        %2276 = vst [vmem:[%s151 + $0x250] sm:$0xff] %v934
        %2277 = vst [vmem:[%s151 + $0x258] sm:$0xff] %v941
        %2278 = vst [vmem:[%s151 + $0x260] sm:$0xff] %v948
        %2279 = vst [vmem:[%s151 + $0x268] sm:$0xff] %v955
        %2280 = vst [vmem:[%s151 + $0x270] sm:$0xff] %v962
        %2281 = vst [vmem:[%s151 + $0x278] sm:$0xff] %v969
        %2282 = vst [vmem:[%s151 + $0x280] sm:$0xff] %v976
        %2283 = vst [vmem:[%s151 + $0x288] sm:$0xff] %v983
        %2284 = vst [vmem:[%s151 + $0x290] sm:$0xff] %v990
        %2285 = vst [vmem:[%s151 + $0x298] sm:$0xff] %v997
        %2286 = vst [vmem:[%s151 + $0x2a0] sm:$0xff] %v1004
        %2287 = vst [vmem:[%s151 + $0x2a8] sm:$0xff] %v1011
        %2288 = vst [vmem:[%s151 + $0x2b0] sm:$0xff] %v1018
        %2289 = vst [vmem:[%s151 + $0x2b8] sm:$0xff] %v1025
        %2290 = vst [vmem:[%s151 + $0x2c0] sm:$0xff] %v1032
        %2291 = vst [vmem:[%s151 + $0x2c8] sm:$0xff] %v1039
        %2292 = vst [vmem:[%s151 + $0x2d0] sm:$0xff] %v1046
        %2293 = vst [vmem:[%s151 + $0x2d8] sm:$0xff] %v1053
        %2294 = vst [vmem:[%s151 + $0x2e0] sm:$0xff] %v1060
        %2295 = vst [vmem:[%s151 + $0x2e8] sm:$0xff] %v1067
        %2296 = vst [vmem:[%s151 + $0x2f0] sm:$0xff] %v1074
        %2297 = vst [vmem:[%s151 + $0x2f8] sm:$0xff] %v1081
        %2298 = vst [vmem:[%s151 + $0x300] sm:$0xff] %v1088
        %2299 = vst [vmem:[%s151 + $0x308] sm:$0xff] %v1095
        %2300 = vst [vmem:[%s151 + $0x310] sm:$0xff] %v1102
        %2301 = vst [vmem:[%s151 + $0x318] sm:$0xff] %v1109
        %2302 = vst [vmem:[%s151 + $0x320] sm:$0xff] %v1116
        %2303 = vst [vmem:[%s151 + $0x328] sm:$0xff] %v1123
        %2304 = vst [vmem:[%s151 + $0x330] sm:$0xff] %v1130
        %2305 = vst [vmem:[%s151 + $0x338] sm:$0xff] %v1137
        %2306 = vst [vmem:[%s151 + $0x340] sm:$0xff] %v1144
        %2307 = vst [vmem:[%s151 + $0x348] sm:$0xff] %v1151
        %2308 = vst [vmem:[%s151 + $0x350] sm:$0xff] %v1158
        %2309 = vst [vmem:[%s151 + $0x358] sm:$0xff] %v1165
        %2310 = vst [vmem:[%s151 + $0x360] sm:$0xff] %v1172
        %2311 = vst [vmem:[%s151 + $0x368] sm:$0xff] %v1179
        %2312 = vst [vmem:[%s151 + $0x370] sm:$0xff] %v1186
        %2313 = vst [vmem:[%s151 + $0x378] sm:$0xff] %v1193
        %2314 = vst [vmem:[%s151 + $0x380] sm:$0xff] %v1200
        %2315 = vst [vmem:[%s151 + $0x388] sm:$0xff] %v1207
        %2316 = vst [vmem:[%s151 + $0x390] sm:$0xff] %v1214
        %2317 = vst [vmem:[%s151 + $0x398] sm:$0xff] %v1221
        %2318 = vst [vmem:[%s151 + $0x3a0] sm:$0xff] %v1228
        %2319 = vst [vmem:[%s151 + $0x3a8] sm:$0xff] %v1235
        %2320 = vst [vmem:[%s151 + $0x3b0] sm:$0xff] %v1242
        %2321 = vst [vmem:[%s151 + $0x3b8] sm:$0xff] %v1249
        %2322 = vst [vmem:[%s151 + $0x3c0] sm:$0xff] %v1256
        %2323 = vst [vmem:[%s151 + $0x3c8] sm:$0xff] %v1263
        %2324 = vst [vmem:[%s151 + $0x3d0] sm:$0xff] %v1270
        %2325 = vst [vmem:[%s151 + $0x3d8] sm:$0xff] %v1277
        %2326 = vst [vmem:[%s151 + $0x3e0] sm:$0xff] %v1284
        %2327 = vst [vmem:[%s151 + $0x3e8] sm:$0xff] %v1291
        %2328 = vst [vmem:[%s151 + $0x3f0] sm:$0xff] %v1298
        %2329 = vst [vmem:[%s151 + $0x3f8] sm:$0xff] %v1305
        %2330 = vst [vmem:[%s151 + $0x400] sm:$0xff] %v1312
        %2331 = vst [vmem:[%s151 + $0x408] sm:$0xff] %v1319
        %2332 = vst [vmem:[%s151 + $0x410] sm:$0xff] %v1326
        %2333 = vst [vmem:[%s151 + $0x418] sm:$0xff] %v1333
        %2334 = vst [vmem:[%s151 + $0x420] sm:$0xff] %v1340
        %2335 = vst [vmem:[%s151 + $0x428] sm:$0xff] %v1347
        %2336 = vst [vmem:[%s151 + $0x430] sm:$0xff] %v1354
        %2337 = vst [vmem:[%s151 + $0x438] sm:$0xff] %v1361
        %2338 = vst [vmem:[%s151 + $0x440] sm:$0xff] %v1368
        %2339 = vst [vmem:[%s151 + $0x448] sm:$0xff] %v1375
        %2340 = vst [vmem:[%s151 + $0x450] sm:$0xff] %v1382
        %2341 = vst [vmem:[%s151 + $0x458] sm:$0xff] %v1389
        %2342 = vst [vmem:[%s151 + $0x460] sm:$0xff] %v1396
        %2343 = vst [vmem:[%s151 + $0x468] sm:$0xff] %v1403
        %2344 = vst [vmem:[%s151 + $0x470] sm:$0xff] %v1410
        %2345 = vst [vmem:[%s151 + $0x478] sm:$0xff] %v1417
        %2346 = vst [vmem:[%s151 + $0x480] sm:$0xff] %v1424
        %2347 = vst [vmem:[%s151 + $0x488] sm:$0xff] %v1431
        %2348 = vst [vmem:[%s151 + $0x490] sm:$0xff] %v1438
        %2349 = vst [vmem:[%s151 + $0x498] sm:$0xff] %v1445
        %2350 = vst [vmem:[%s151 + $0x4a0] sm:$0xff] %v1452
        %2351 = vst [vmem:[%s151 + $0x4a8] sm:$0xff] %v1459
        %2352 = vst [vmem:[%s151 + $0x4b0] sm:$0xff] %v1466
        %2353 = vst [vmem:[%s151 + $0x4b8] sm:$0xff] %v1473
        %2354 = vst [vmem:[%s151 + $0x4c0] sm:$0xff] %v1480
        %2355 = vst [vmem:[%s151 + $0x4c8] sm:$0xff] %v1487
        %2356 = vst [vmem:[%s151 + $0x4d0] sm:$0xff] %v1494
        %2357 = vst [vmem:[%s151 + $0x4d8] sm:$0xff] %v1501
        %2358 = vst [vmem:[%s151 + $0x4e0] sm:$0xff] %v1508
        %2359 = vst [vmem:[%s151 + $0x4e8] sm:$0xff] %v1515
        %2360 = vst [vmem:[%s151 + $0x4f0] sm:$0xff] %v1522
        %2361 = vst [vmem:[%s151 + $0x4f8] sm:$0xff] %v1529
        %2362 = vst [vmem:[%s151 + $0x500] sm:$0xff] %v1536
        %2363 = vst [vmem:[%s151 + $0x508] sm:$0xff] %v1543
        %2364 = vst [vmem:[%s151 + $0x510] sm:$0xff] %v1550
        %2365 = vst [vmem:[%s151 + $0x518] sm:$0xff] %v1557
        %2366 = vst [vmem:[%s151 + $0x520] sm:$0xff] %v1564
        %2367 = vst [vmem:[%s151 + $0x528] sm:$0xff] %v1571
        %2368 = vst [vmem:[%s151 + $0x530] sm:$0xff] %v1578
        %2369 = vst [vmem:[%s151 + $0x538] sm:$0xff] %v1585
        %2370 = vst [vmem:[%s151 + $0x540] sm:$0xff] %v1592
        %2371 = vst [vmem:[%s151 + $0x548] sm:$0xff] %v1599
        %2372 = vst [vmem:[%s151 + $0x550] sm:$0xff] %v1606
        %2373 = vst [vmem:[%s151 + $0x558] sm:$0xff] %v1613
        %2374 = vst [vmem:[%s151 + $0x560] sm:$0xff] %v1620
        %2375 = vst [vmem:[%s151 + $0x568] sm:$0xff] %v1627
        %2376 = vst [vmem:[%s151 + $0x570] sm:$0xff] %v1634
        %2377 = vst [vmem:[%s151 + $0x578] sm:$0xff] %v1641
        %2378 = vst [vmem:[%s151 + $0x580] sm:$0xff] %v1648
        %2379 = vst [vmem:[%s151 + $0x588] sm:$0xff] %v1655
        %2380 = vst [vmem:[%s151 + $0x590] sm:$0xff] %v1662
        %2381 = vst [vmem:[%s151 + $0x598] sm:$0xff] %v1669
        %2382 = vst [vmem:[%s151 + $0x5a0] sm:$0xff] %v1676
        %2383 = vst [vmem:[%s151 + $0x5a8] sm:$0xff] %v1683
        %2384 = vst [vmem:[%s151 + $0x5b0] sm:$0xff] %v1690
        %2385 = vst [vmem:[%s151 + $0x5b8] sm:$0xff] %v1697
        %2386 = vst [vmem:[%s151 + $0x5c0] sm:$0xff] %v1704
        %2387 = vst [vmem:[%s151 + $0x5c8] sm:$0xff] %v1711
        %2388 = vst [vmem:[%s151 + $0x5d0] sm:$0xff] %v1718
        %2389 = vst [vmem:[%s151 + $0x5d8] sm:$0xff] %v1725
        %2390 = vst [vmem:[%s151 + $0x5e0] sm:$0xff] %v1732
        %2391 = vst [vmem:[%s151 + $0x5e8] sm:$0xff] %v1739
        %2392 = vst [vmem:[%s151 + $0x5f0] sm:$0xff] %v1746
        %2393 = vst [vmem:[%s151 + $0x5f8] sm:$0xff] %v1753
        %2394 = vst [vmem:[%s151 + $0x600] sm:$0xff] %v1760
        %2395 = vst [vmem:[%s151 + $0x608] sm:$0xff] %v1767
        %2396 = vst [vmem:[%s151 + $0x610] sm:$0xff] %v1774
        %2397 = vst [vmem:[%s151 + $0x618] sm:$0xff] %v1781
        %2398 = vst [vmem:[%s151 + $0x620] sm:$0xff] %v1788
        %2399 = vst [vmem:[%s151 + $0x628] sm:$0xff] %v1795
        %2400 = vst [vmem:[%s151 + $0x630] sm:$0xff] %v1802
        %2401 = vst [vmem:[%s151 + $0x638] sm:$0xff] %v1809
        %2402 = vst [vmem:[%s151 + $0x640] sm:$0xff] %v1816
        %2403 = vst [vmem:[%s151 + $0x648] sm:$0xff] %v1823
        %2404 = vst [vmem:[%s151 + $0x650] sm:$0xff] %v1830
        %2405 = vst [vmem:[%s151 + $0x658] sm:$0xff] %v1837
        %2406 = vst [vmem:[%s151 + $0x660] sm:$0xff] %v1844
        %2407 = vst [vmem:[%s151 + $0x668] sm:$0xff] %v1851
        %2408 = vst [vmem:[%s151 + $0x670] sm:$0xff] %v1858
        %2409 = vst [vmem:[%s151 + $0x678] sm:$0xff] %v1865
        %2410 = vst [vmem:[%s151 + $0x680] sm:$0xff] %v1872
        %2411 = vst [vmem:[%s151 + $0x688] sm:$0xff] %v1879
        %2412 = vst [vmem:[%s151 + $0x690] sm:$0xff] %v1886
        %2413 = vst [vmem:[%s151 + $0x698] sm:$0xff] %v1893
        %2414 = vst [vmem:[%s151 + $0x6a0] sm:$0xff] %v1900
        %2415 = vst [vmem:[%s151 + $0x6a8] sm:$0xff] %v1907
        %2416 = vst [vmem:[%s151 + $0x6b0] sm:$0xff] %v1914
        %2417 = vst [vmem:[%s151 + $0x6b8] sm:$0xff] %v1921
        %2418 = vst [vmem:[%s151 + $0x6c0] sm:$0xff] %v1928
        %2419 = vst [vmem:[%s151 + $0x6c8] sm:$0xff] %v1935
        %2420 = vst [vmem:[%s151 + $0x6d0] sm:$0xff] %v1942
        %2421 = vst [vmem:[%s151 + $0x6d8] sm:$0xff] %v1949
        %2422 = vst [vmem:[%s151 + $0x6e0] sm:$0xff] %v1956
        %2423 = vst [vmem:[%s151 + $0x6e8] sm:$0xff] %v1963
        %2424 = vst [vmem:[%s151 + $0x6f0] sm:$0xff] %v1970
        %2425 = vst [vmem:[%s151 + $0x6f8] sm:$0xff] %v1977
        %2426 = vst [vmem:[%s151 + $0x700] sm:$0xff] %v1984
        %2427 = vst [vmem:[%s151 + $0x708] sm:$0xff] %v1991
        %2428 = vst [vmem:[%s151 + $0x710] sm:$0xff] %v1998
        %2429 = vst [vmem:[%s151 + $0x718] sm:$0xff] %v2005
        %2430 = vst [vmem:[%s151 + $0x720] sm:$0xff] %v2012
        %2431 = vst [vmem:[%s151 + $0x728] sm:$0xff] %v2019
        %2432 = vst [vmem:[%s151 + $0x730] sm:$0xff] %v2026
        %2433 = vst [vmem:[%s151 + $0x738] sm:$0xff] %v2033
        %2434 = vst [vmem:[%s151 + $0x740] sm:$0xff] %v2040
        %2435 = vst [vmem:[%s151 + $0x748] sm:$0xff] %v2047
        %2436 = vst [vmem:[%s151 + $0x750] sm:$0xff] %v2054
        %2437 = vst [vmem:[%s151 + $0x758] sm:$0xff] %v2061
        %2438 = vst [vmem:[%s151 + $0x760] sm:$0xff] %v2068
        %2439 = vst [vmem:[%s151 + $0x768] sm:$0xff] %v2075
        %2440 = vst [vmem:[%s151 + $0x770] sm:$0xff] %v2082
        %2441 = vst [vmem:[%s151 + $0x778] sm:$0xff] %v2089
        %2442 = vst [vmem:[%s151 + $0x780] sm:$0xff] %v2096
        %2443 = vst [vmem:[%s151 + $0x788] sm:$0xff] %v2103
        %2444 = vst [vmem:[%s151 + $0x790] sm:$0xff] %v2110
        %2445 = vst [vmem:[%s151 + $0x798] sm:$0xff] %v2117
        %2446 = vst [vmem:[%s151 + $0x7a0] sm:$0xff] %v2124
        %2447 = vst [vmem:[%s151 + $0x7a8] sm:$0xff] %v2131
        %2448 = vst [vmem:[%s151 + $0x7b0] sm:$0xff] %v2138
        %2449 = vst [vmem:[%s151 + $0x7b8] sm:$0xff] %v2145
        %2450 = vst [vmem:[%s151 + $0x7c0] sm:$0xff] %v2152
        %2451 = vst [vmem:[%s151 + $0x7c8] sm:$0xff] %v2159
        %2452 = vst [vmem:[%s151 + $0x7d0] sm:$0xff] %v2166
        %2453 = vst [vmem:[%s151 + $0x7d8] sm:$0xff] %v2173
        %2454 = vst [vmem:[%s151 + $0x7e0] sm:$0xff] %v2180
        %2455 = vst [vmem:[%s151 + $0x7e8] sm:$0xff] %v2187
        %2456 = vst [vmem:[%s151 + $0x7f0] sm:$0xff] %v2194
        %2457 = vst [vmem:[%s151 + $0x7f8] sm:$0xff] %v2201
        %s2458 = sand.u32 %s68, 1
        %s2459 = scalar_lea.sflag [#allocation4], %s2458
        %s2460 = sand.u32 %s68, 1
        %s2461 = smul.addr %s2460, 2048
        %s2462 = scalar_lea.vmem [#allocation5], %s2461
        // Predicated region
        $region29: #{tpu_custom_call.1} parent=23 // pred_check
          %p2463 = pneg %p78
        $region30: #{tpu_custom_call.1} parent=23 // pred_check_branch
          %2465 = sbr.rel (%p2463) target = $region32
        $region31: #{tpu_custom_call.1} parent=23 // pred_region
          %s2466 = smul.u32 256, %s22
          %s2468 = ssub.s32 32768, 32768
          %2469 = vsyncadd %s2459, %s2468
          %s2470 = sadd.s32 %s23, %s2466
          %s2471 = smul.addr %s2470, 128
          %s2472 = scalar_lea.hbm %s1, %s2471
          %s2473 = sshll.u32 %s2462, 4
          %s2474 = int_to_ptr.vmem [resolvable:$true] %s2473
          %2479 = dma.vmem_to_hbm [thread:$0]  %s2474, 32768, %s2472, %s2459, 128, 128, 8
        $region32: #{tpu_custom_call.1} parent=23 // pred_fallthru
          _
      $region24: #{tpu_custom_call.1} parent=5 // pred_fallthru
        _
      %p2480 = scmp.le.s32.totalorder 2, %s13
      // Predicated region
      $region33: #{tpu_custom_call.1} parent=5 // pred_check
        %p2481 = pneg %p2480
      $region34: #{tpu_custom_call.1} parent=5 // pred_check_branch
        %2483 = sbr.rel (%p2481) target = $region36
      $region35: #{tpu_custom_call.1} parent=5 // pred_region
        %s2484 = ssub.s32 %s13, 2
        // Predicated region
        $region37: #{tpu_custom_call.1} parent=35 // pred_check
          %p2485 = pneg %p84
        $region38: #{tpu_custom_call.1} parent=35 // pred_check_branch
          %2487 = sbr.rel (%p2485) target = $region40
        $region39: #{tpu_custom_call.1} parent=35 // pred_region
          %s2488 = sand.u32 %s69, 1
          %s2489 = scalar_lea.sflag [#allocation4], %s2488
          %s2490 = sand.u32 %s69, 1
          %s2491 = smul.addr %s2490, 2048
          %s2492 = scalar_lea.vmem [#allocation5], %s2491
          %2493 = dma.done %s2489, 32768
        $region40: #{tpu_custom_call.1} parent=35 // pred_fallthru
          _
      $region36: #{tpu_custom_call.1} parent=5 // pred_fallthru
        _
    $region6: #{tpu_custom_call.1} parent=1 // loop_footer
      %s17 = sadd.s32 1, %s13
    $region7: #{tpu_custom_call.1} parent=1 // loop_footer_branch
      %12 = sbr.rel target = $region3
    $region8: #{tpu_custom_call.1} parent=1 // loop_exit
      _
    %2494 = vsyncpa [#allocation3], 1
    %s2495 = scalar_lea.sflag [#allocation3], 1
    %2496 = vsyncpa %s2495, 1
    %2497 = vsyncpa [#allocation4], 1
    %s2498 = scalar_lea.sflag [#allocation4], 1
    %2499 = vsyncpa %s2498, 1

</llo_original>
